<compile_context>
chip_gen: v6e
topology: v6e:2x2x1
jax: 0.10.0
libtpu: 0.0.40
codegen_flags: <defaults>
</compile_context>

<pallas_src>
import jax
import jax.numpy as jnp
import numpy as np
from jax.experimental import pallas as pl
from jax.experimental.pallas import tpu as pltpu

EPS = 1e-5           # nn.BatchNorm2d default
DILATIONS = (6, 12, 18)


def aspp_pallas(x_nchw, params, *, compute_dtype=jnp.float32):
    """ASPP forward (eval-mode BN folded into the convs). Returns NCHW."""
    N, Cin, H, W = x_nchw.shape
    if H != W:
        # The PyTorch module's interpolate(size=(W, H)) + cat implicitly
        # requires square spatial inputs.
        raise ValueError("AtrousSpatialPyramidPooling requires H == W")
    HW = H * W
    Cout = params["b1"]["w"].shape[0]

    # ---- static tap tables for the dilated branches ------------------------
    # A tap whose shift is >= the image extent only ever reads zero padding
    # and is dropped at trace time (exactly preserves semantics).
    tap_offs, tap_idxs = [], []
    for d in DILATIONS:
        offs, idxs = [], []
        for ky in range(3):
            for kx in range(3):
                dy, dx = (ky - 1) * d, (kx - 1) * d
                if abs(dy) < H and abs(dx) < W:
                    offs.append((dy, dx))
                    idxs.append((ky, kx))
        tap_offs.append(offs)
        tap_idxs.append(idxs)

    # Zero guard (in VMEM only, never in HBM) so that every tap shift becomes
    # an in-bounds *static* lane-offset slice of the flattened image.
    max_off = max((abs(dy * W + dx) for offs in tap_offs for dy, dx in offs),
                  default=0)
    GUARD = ((max_off + 127) // 128) * 128 if max_off else 0

    # ---- fold eval-mode BatchNorm into the conv weights ---------------------
    def fold(p):
        scale = (p["gamma"] / jnp.sqrt(p["var"] + EPS)).astype(jnp.float32)
        bias = (p["beta"].astype(jnp.float32)
                - p["mean"].astype(jnp.float32) * scale).reshape(Cout, 1)
        w = p["w"].astype(jnp.float32) * scale[:, None, None, None]
        return w, bias                       # (Cout, Cin, kh, kw), (Cout, 1)

    w1f, b1 = fold(params["b1"])
    w5f, b5 = fold(params["b5"])
    w1 = w1f[:, :, 0, 0].astype(compute_dtype)            # (Cout, Cin)
    w5 = w5f[:, :, 0, 0].astype(compute_dtype)            # (Cout, Cin)

    w_stk, b_dil = [], []
    for name, idxs in zip(("b2", "b3", "b4"), tap_idxs):
        wf, b = fold(params[name])
        w_stk.append(jnp.concatenate(
            [wf[:, :, ky, kx] for ky, kx in idxs],
            axis=1).astype(compute_dtype))                 # (Cout, ntaps*Cin)
        b_dil.append(b)
    w2, w3, w4 = w_stk
    b2, b3, b4 = b_dil

    # ---- precomputed 0/1 zero-padding masks (one row per tap) --------------
    yy = np.arange(HW, dtype=np.int64) // W
    xx = np.arange(HW, dtype=np.int64) % W
    mask_rows, row0 = [], []
    r = 0
    for offs in tap_offs:
        row0.append(r)
        for dy, dx in offs:
            ok = ((yy + dy >= 0) & (yy + dy < H) &
                  (xx + dx >= 0) & (xx + dx < W))
            mask_rows.append(ok.astype(np.float32))
            r += 1
    masks = jnp.asarray(np.stack(mask_rows), dtype=compute_dtype)  # (T, HW)
    n_taps_total = masks.shape[0]

    # ---- flattened input (free reshape), no HBM padding ---------------------
    x_flat = x_nchw.reshape(N, Cin, HW).astype(compute_dtype)

    # ---- kernel --------------------------------------------------------------
    def kernel(x_ref, m_ref, w1_ref, b1_ref, w2_ref, b2_ref, w3_ref, b3_ref,
               w4_ref, b4_ref, w5_ref, b5_ref, out_ref):
        x = x_ref[...]                                     # (Cin, HW) lane-dense
        if GUARD:
            zg = jnp.zeros((Cin, GUARD), x.dtype)
            xg = jnp.concatenate([zg, x, zg], axis=1)      # zero-guarded (VMEM)
        else:
            xg = x

        def affine_relu(w_r, b_r, rhs):
            acc = jnp.dot(w_r[...], rhs, preferred_element_type=jnp.float32)
            return jnp.maximum(acc + b_r[...], 0.0)        # (Cout, HW) f32

        # branch 1: 1x1 conv + BN + ReLU
        out_ref[0:Cout, :] = affine_relu(w1_ref, b1_ref, x)

        # branches 2-4: dilated 3x3 conv + BN + ReLU; all taps fused into one
        # matmul.  Each tap = static lane-offset slice of the guarded image
        # times its precomputed zero-padding mask.
        def dilated(w_r, b_r, offs, r0, slot):
            parts = []
            for t, (dy, dx) in enumerate(offs):
                s = GUARD + dy * W + dx                    # static offset
                patch = xg[:, s:s + HW]                    # (Cin, HW)
                if dy or dx:                               # center tap needs no mask
                    patch = patch * m_ref[r0 + t:r0 + t + 1, :]
                parts.append(patch)
            rhs = parts[0] if len(parts) == 1 else jnp.concatenate(parts, axis=0)
            out_ref[slot * Cout:(slot + 1) * Cout, :] = affine_relu(w_r, b_r, rhs)

        dilated(w2_ref, b2_ref, tap_offs[0], row0[0], 1)
        dilated(w3_ref, b3_ref, tap_offs[1], row0[1], 2)
        dilated(w4_ref, b4_ref, tap_offs[2], row0[2], 3)

        # branch 5: global avg pool -> 1x1 conv -> BN -> ReLU -> broadcast
        # (pool commutes with the 1x1 conv: run the conv on the MXU, then a
        #  cheap lane reduction; bilinear upsample of a 1x1 map == broadcast.)
        t5 = jnp.dot(w5_ref[...], x, preferred_element_type=jnp.float32)
        pooled = jnp.sum(t5, axis=1, keepdims=True) * (1.0 / HW)   # (Cout, 1)
        o5 = jnp.maximum(pooled + b5_ref[...], 0.0)
        out_ref[4 * Cout:5 * Cout, :] = jnp.broadcast_to(o5, (Cout, HW))

    out_flat = pl.pallas_call(
        kernel,
        out_shape=jax.ShapeDtypeStruct((N, 5 * Cout, HW), jnp.float32),
        grid_spec=pltpu.PrefetchScalarGridSpec(
            num_scalar_prefetch=0,
            grid=(N,),
            in_specs=[
                pl.BlockSpec((None, Cin, HW), lambda n: (n, 0, 0)),
                pl.BlockSpec((n_taps_total, HW), lambda n: (0, 0)),
                pl.BlockSpec((Cout, Cin), lambda n: (0, 0)),
                pl.BlockSpec((Cout, 1), lambda n: (0, 0)),
                pl.BlockSpec(w2.shape, lambda n: (0, 0)),
                pl.BlockSpec((Cout, 1), lambda n: (0, 0)),
                pl.BlockSpec(w3.shape, lambda n: (0, 0)),
                pl.BlockSpec((Cout, 1), lambda n: (0, 0)),
                pl.BlockSpec(w4.shape, lambda n: (0, 0)),
                pl.BlockSpec((Cout, 1), lambda n: (0, 0)),
                pl.BlockSpec((Cout, Cin), lambda n: (0, 0)),
                pl.BlockSpec((Cout, 1), lambda n: (0, 0)),
            ],
            out_specs=pl.BlockSpec((None, 5 * Cout, HW), lambda n: (n, 0, 0)),
        ),
        compiler_params=pltpu.CompilerParams(
            dimension_semantics=("parallel",),
            vmem_limit_bytes=48 * 1024 * 1024,
        ),
    )(x_flat, masks, w1, b1, w2, b2, w3, b3, w4, b4, w5, b5)

    # (N, 5*Cout, H*W) is flattened NCHW -> free reshape, no transpose.
    return out_flat.reshape(N, 5 * Cout, H, W)


# ---------------- pure-JAX reference (NCHW, mirrors the PyTorch module) ------
def ref_aspp(x, params):
    def bn_eval(y, p):
        g = p["gamma"][None, :, None, None]
        b = p["beta"][None, :, None, None]
        m = p["mean"][None, :, None, None]
        v = p["var"][None, :, None, None]
        return (y - m) / jnp.sqrt(v + EPS) * g + b

    def conv(y, w, dilation, padding):
        return jax.lax.conv_general_dilated(
            y, w, window_strides=(1, 1),
            padding=[(padding, padding), (padding, padding)],
            rhs_dilation=(dilation, dilation),
            dimension_numbers=("NCHW", "OIHW", "NCHW"))

    outs = []
    for name, dil, pad in [("b1", 1, 0), ("b2", 6, 6), ("b3", 12, 12), ("b4", 18, 18)]:
        p = params[name]
        outs.append(jax.nn.relu(bn_eval(conv(x, p["w"], dil, pad), p)))

    p = params["b5"]
    pooled = jnp.mean(x, axis=(2, 3), keepdims=True)
    y5 = jax.nn.relu(bn_eval(conv(pooled, p["w"], 1, 0), p))
    H, W = x.shape[2], x.shape[3]
    # bilinear upsample of a 1x1 map == broadcast (input is square)
    y5 = jnp.broadcast_to(y5, (x.shape[0], y5.shape[1], H, W))
    outs.append(y5)
    return jnp.concatenate(outs, axis=1)


def make_branch(key, cout, cin, k):
    k1, k2, k3, k4, k5 = jax.random.split(key, 5)
    return {
        "w": 0.1 * jax.random.normal(k1, (cout, cin, k, k), jnp.float32),
        "gamma": 1.0 + 0.1 * jax.random.normal(k2, (cout,), jnp.float32),
        "beta": 0.1 * jax.random.normal(k3, (cout,), jnp.float32),
        "mean": 0.05 * jax.random.normal(k4, (cout,), jnp.float32),
        "var": jax.random.uniform(k5, (cout,), jnp.float32, 0.5, 1.5),
    }


if __name__ == "__main__":
    N, Cin, Cout, H, W = 2, 4, 8, 16, 16
    key = jax.random.PRNGKey(0)
    keys = jax.random.split(key, 6)
    params = {
        "b1": make_branch(keys[0], Cout, Cin, 1),
        "b2": make_branch(keys[1], Cout, Cin, 3),
        "b3": make_branch(keys[2], Cout, Cin, 3),
        "b4": make_branch(keys[3], Cout, Cin, 3),
        "b5": make_branch(keys[4], Cout, Cin, 1),
    }
    x = jax.random.normal(keys[5], (N, Cin, H, W), jnp.float32)

    out = aspp_pallas(x, params)
    jax.block_until_ready(out)

    ref = ref_aspp(x, params)
    assert out.shape == ref.shape == (N, 5 * Cout, H, W)
    np.testing.assert_allclose(np.asarray(out), np.asarray(ref),
                               rtol=1e-4, atol=1e-4)
    print("KERNEL_OK")
</pallas_src>

<mosaic_0001>
module attributes {stable_mosaic.version = 11 : i64} {
  func.func @kernel(%arg0: i32, %arg1: memref<1x4x256xf32, #tpu.memory_space<vmem>>, %arg2: memref<19x256xf32, #tpu.memory_space<vmem>>, %arg3: memref<8x4xf32, #tpu.memory_space<vmem>>, %arg4: memref<8x1xf32, #tpu.memory_space<vmem>>, %arg5: memref<8x36xf32, #tpu.memory_space<vmem>>, %arg6: memref<8x1xf32, #tpu.memory_space<vmem>>, %arg7: memref<8x36xf32, #tpu.memory_space<vmem>>, %arg8: memref<8x1xf32, #tpu.memory_space<vmem>>, %arg9: memref<8x4xf32, #tpu.memory_space<vmem>>, %arg10: memref<8x1xf32, #tpu.memory_space<vmem>>, %arg11: memref<8x4xf32, #tpu.memory_space<vmem>>, %arg12: memref<8x1xf32, #tpu.memory_space<vmem>>, %arg13: memref<1x40x256xf32, #tpu.memory_space<vmem>>) attributes {dimension_semantics = [#tpu.dimension_semantics<parallel>], iteration_bounds = array<i64: 2>, scalar_prefetch = 0 : i64, scratch_operands = 0 : i64, tpu.core_type = #tpu.core_type<tc>, window_params = [{transform_indices = @transform_0, window_bounds = array<i64: 1, 4, 256>}, {pipeline_mode = #tpu.pipeline_mode<synchronous>, transform_indices = @transform_1, window_bounds = array<i64: 19, 256>}, {pipeline_mode = #tpu.pipeline_mode<synchronous>, transform_indices = @transform_2, window_bounds = array<i64: 8, 4>}, {pipeline_mode = #tpu.pipeline_mode<synchronous>, transform_indices = @transform_3, window_bounds = array<i64: 8, 1>}, {pipeline_mode = #tpu.pipeline_mode<synchronous>, transform_indices = @transform_4, window_bounds = array<i64: 8, 36>}, {pipeline_mode = #tpu.pipeline_mode<synchronous>, transform_indices = @transform_5, window_bounds = array<i64: 8, 1>}, {pipeline_mode = #tpu.pipeline_mode<synchronous>, transform_indices = @transform_6, window_bounds = array<i64: 8, 36>}, {pipeline_mode = #tpu.pipeline_mode<synchronous>, transform_indices = @transform_7, window_bounds = array<i64: 8, 1>}, {pipeline_mode = #tpu.pipeline_mode<synchronous>, transform_indices = @transform_8, window_bounds = array<i64: 8, 4>}, {pipeline_mode = #tpu.pipeline_mode<synchronous>, transform_indices = @transform_9, window_bounds = array<i64: 8, 1>}, {pipeline_mode = #tpu.pipeline_mode<synchronous>, transform_indices = @transform_10, window_bounds = array<i64: 8, 4>}, {pipeline_mode = #tpu.pipeline_mode<synchronous>, transform_indices = @transform_11, window_bounds = array<i64: 8, 1>}, {transform_indices = @transform_12, window_bounds = array<i64: 1, 40, 256>}]} {
    %c0 = arith.constant 0 : index
    %c0_0 = arith.constant 0 : index
    %c0_1 = arith.constant 0 : index
    %0 = vector.load %arg1[%c0, %c0_0, %c0_1] : memref<1x4x256xf32, #tpu.memory_space<vmem>>, vector<1x4x256xf32>
    %1 = vector.shape_cast %0 : vector<1x4x256xf32> to vector<4x256xf32>
    %cst = arith.constant 0.000000e+00 : f32
    %2 = vector.broadcast %cst : f32 to vector<4x256xf32>
    %3 = tpu.concatenate %2, %1, %2 in 1 : vector<4x256xf32>, vector<4x256xf32>, vector<4x256xf32> -> vector<4x768xf32>
    %c0_2 = arith.constant 0 : index
    %c0_3 = arith.constant 0 : index
    %4 = vector.load %arg3[%c0_2, %c0_3] : memref<8x4xf32, #tpu.memory_space<vmem>>, vector<8x4xf32>
    %cst_4 = arith.constant dense<0.000000e+00> : vector<8x256xf32>
    %5 = tpu.matmul %4, %1, %cst_4 {dimension_numbers = #tpu.dot_dimension_numbers<[1], [0], [0], [1], [0, 0, 1, 1], [], []>} : vector<8x4xf32>, vector<4x256xf32>, vector<8x256xf32> -> vector<8x256xf32>
    %c0_5 = arith.constant 0 : index
    %c0_6 = arith.constant 0 : index
    %6 = vector.load %arg4[%c0_5, %c0_6] : memref<8x1xf32, #tpu.memory_space<vmem>>, vector<8x1xf32>
    %7 = vector.broadcast %6 : vector<8x1xf32> to vector<8x256xf32>
    %8 = arith.addf %5, %7 : vector<8x256xf32>
    %cst_7 = arith.constant 0.000000e+00 : f32
    %9 = vector.broadcast %cst_7 : f32 to vector<8x256xf32>
    %10 = arith.maximumf %8, %9 : vector<8x256xf32>
    %c0_8 = arith.constant 0 : index
    %c0_9 = arith.constant 0 : index
    %c0_10 = arith.constant 0 : index
    %11 = vector.load %arg13[%c0_8, %c0_9, %c0_10] : memref<1x40x256xf32, #tpu.memory_space<vmem>>, vector<1x8x256xf32>
    %12 = vector.shape_cast %11 : vector<1x8x256xf32> to vector<8x256xf32>
    %13 = vector.shape_cast %10 : vector<8x256xf32> to vector<1x8x256xf32>
    tpu.vector_store %arg13[%c0_8, %c0_9, %c0_10], %13 {strides = array<i32>} : memref<1x40x256xf32, #tpu.memory_space<vmem>>, vector<1x8x256xf32>,
    %14 = vector.extract_strided_slice %3 {offsets = [0, 154], sizes = [4, 256], strides = [1, 1]} : vector<4x768xf32> to vector<4x256xf32>
    %c0_11 = arith.constant 0 : index
    %c0_12 = arith.constant 0 : index
    %15 = vector.load %arg2[%c0_11, %c0_12] : memref<19x256xf32, #tpu.memory_space<vmem>>, vector<1x256xf32>
    %16 = vector.broadcast %15 : vector<1x256xf32> to vector<4x256xf32>
    %17 = arith.mulf %14, %16 : vector<4x256xf32>
    %18 = vector.extract_strided_slice %3 {offsets = [0, 160], sizes = [4, 256], strides = [1, 1]} : vector<4x768xf32> to vector<4x256xf32>
    %c1 = arith.constant 1 : index
    %c0_13 = arith.constant 0 : index
    %19 = vector.load %arg2[%c1, %c0_13] : memref<19x256xf32, #tpu.memory_space<vmem>>, vector<1x256xf32>
    %20 = vector.broadcast %19 : vector<1x256xf32> to vector<4x256xf32>
    %21 = arith.mulf %18, %20 : vector<4x256xf32>
    %22 = vector.extract_strided_slice %3 {offsets = [0, 166], sizes = [4, 256], strides = [1, 1]} : vector<4x768xf32> to vector<4x256xf32>
    %c2 = arith.constant 2 : index
    %c0_14 = arith.constant 0 : index
    %23 = vector.load %arg2[%c2, %c0_14] : memref<19x256xf32, #tpu.memory_space<vmem>>, vector<1x256xf32>
    %24 = vector.broadcast %23 : vector<1x256xf32> to vector<4x256xf32>
    %25 = arith.mulf %22, %24 : vector<4x256xf32>
    %26 = vector.extract_strided_slice %3 {offsets = [0, 250], sizes = [4, 256], strides = [1, 1]} : vector<4x768xf32> to vector<4x256xf32>
    %c3 = arith.constant 3 : index
    %c0_15 = arith.constant 0 : index
    %27 = vector.load %arg2[%c3, %c0_15] : memref<19x256xf32, #tpu.memory_space<vmem>>, vector<1x256xf32>
    %28 = vector.broadcast %27 : vector<1x256xf32> to vector<4x256xf32>
    %29 = arith.mulf %26, %28 : vector<4x256xf32>
    %30 = vector.extract_strided_slice %3 {offsets = [0, 256], sizes = [4, 256], strides = [1, 1]} : vector<4x768xf32> to vector<4x256xf32>
    %31 = vector.extract_strided_slice %3 {offsets = [0, 262], sizes = [4, 256], strides = [1, 1]} : vector<4x768xf32> to vector<4x256xf32>
    %c5 = arith.constant 5 : index
    %c0_16 = arith.constant 0 : index
    %32 = vector.load %arg2[%c5, %c0_16] : memref<19x256xf32, #tpu.memory_space<vmem>>, vector<1x256xf32>
    %33 = vector.broadcast %32 : vector<1x256xf32> to vector<4x256xf32>
    %34 = arith.mulf %31, %33 : vector<4x256xf32>
    %35 = vector.extract_strided_slice %3 {offsets = [0, 346], sizes = [4, 256], strides = [1, 1]} : vector<4x768xf32> to vector<4x256xf32>
    %c6 = arith.constant 6 : index
    %c0_17 = arith.constant 0 : index
    %36 = vector.load %arg2[%c6, %c0_17] : memref<19x256xf32, #tpu.memory_space<vmem>>, vector<1x256xf32>
    %37 = vector.broadcast %36 : vector<1x256xf32> to vector<4x256xf32>
    %38 = arith.mulf %35, %37 : vector<4x256xf32>
    %39 = vector.extract_strided_slice %3 {offsets = [0, 352], sizes = [4, 256], strides = [1, 1]} : vector<4x768xf32> to vector<4x256xf32>
    %c7 = arith.constant 7 : index
    %c0_18 = arith.constant 0 : index
    %40 = vector.load %arg2[%c7, %c0_18] : memref<19x256xf32, #tpu.memory_space<vmem>>, vector<1x256xf32>
    %41 = vector.broadcast %40 : vector<1x256xf32> to vector<4x256xf32>
    %42 = arith.mulf %39, %41 : vector<4x256xf32>
    %43 = vector.extract_strided_slice %3 {offsets = [0, 358], sizes = [4, 256], strides = [1, 1]} : vector<4x768xf32> to vector<4x256xf32>
    %c8 = arith.constant 8 : index
    %c0_19 = arith.constant 0 : index
    %44 = vector.load %arg2[%c8, %c0_19] : memref<19x256xf32, #tpu.memory_space<vmem>>, vector<1x256xf32>
    %45 = vector.broadcast %44 : vector<1x256xf32> to vector<4x256xf32>
    %46 = arith.mulf %43, %45 : vector<4x256xf32>
    %47 = tpu.concatenate %17, %21, %25, %29, %30, %34, %38, %42, %46 in 0 : vector<4x256xf32>, vector<4x256xf32>, vector<4x256xf32>, vector<4x256xf32>, vector<4x256xf32>, vector<4x256xf32>, vector<4x256xf32>, vector<4x256xf32>, vector<4x256xf32> -> vector<36x256xf32>
    %c0_20 = arith.constant 0 : index
    %c0_21 = arith.constant 0 : index
    %48 = vector.load %arg5[%c0_20, %c0_21] : memref<8x36xf32, #tpu.memory_space<vmem>>, vector<8x36xf32>
    %cst_22 = arith.constant dense<0.000000e+00> : vector<8x256xf32>
    %49 = tpu.matmul %48, %47, %cst_22 {dimension_numbers = #tpu.dot_dimension_numbers<[1], [0], [0], [1], [0, 0, 1, 1], [], []>} : vector<8x36xf32>, vector<36x256xf32>, vector<8x256xf32> -> vector<8x256xf32>
    %c0_23 = arith.constant 0 : index
    %c0_24 = arith.constant 0 : index
    %50 = vector.load %arg6[%c0_23, %c0_24] : memref<8x1xf32, #tpu.memory_space<vmem>>, vector<8x1xf32>
    %51 = vector.broadcast %50 : vector<8x1xf32> to vector<8x256xf32>
    %52 = arith.addf %49, %51 : vector<8x256xf32>
    %cst_25 = arith.constant 0.000000e+00 : f32
    %53 = vector.broadcast %cst_25 : f32 to vector<8x256xf32>
    %54 = arith.maximumf %52, %53 : vector<8x256xf32>
    %c0_26 = arith.constant 0 : index
    %c8_27 = arith.constant 8 : index
    %c0_28 = arith.constant 0 : index
    %55 = vector.load %arg13[%c0_26, %c8_27, %c0_28] : memref<1x40x256xf32, #tpu.memory_space<vmem>>, vector<1x8x256xf32>
    %56 = vector.shape_cast %55 : vector<1x8x256xf32> to vector<8x256xf32>
    %57 = vector.shape_cast %54 : vector<8x256xf32> to vector<1x8x256xf32>
    tpu.vector_store %arg13[%c0_26, %c8_27, %c0_28], %57 {strides = array<i32>} : memref<1x40x256xf32, #tpu.memory_space<vmem>>, vector<1x8x256xf32>,
    %58 = vector.extract_strided_slice %3 {offsets = [0, 52], sizes = [4, 256], strides = [1, 1]} : vector<4x768xf32> to vector<4x256xf32>
    %c9 = arith.constant 9 : index
    %c0_29 = arith.constant 0 : index
    %59 = vector.load %arg2[%c9, %c0_29] : memref<19x256xf32, #tpu.memory_space<vmem>>, vector<1x256xf32>
    %60 = vector.broadcast %59 : vector<1x256xf32> to vector<4x256xf32>
    %61 = arith.mulf %58, %60 : vector<4x256xf32>
    %62 = vector.extract_strided_slice %3 {offsets = [0, 64], sizes = [4, 256], strides = [1, 1]} : vector<4x768xf32> to vector<4x256xf32>
    %c10 = arith.constant 10 : index
    %c0_30 = arith.constant 0 : index
    %63 = vector.load %arg2[%c10, %c0_30] : memref<19x256xf32, #tpu.memory_space<vmem>>, vector<1x256xf32>
    %64 = vector.broadcast %63 : vector<1x256xf32> to vector<4x256xf32>
    %65 = arith.mulf %62, %64 : vector<4x256xf32>
    %66 = vector.extract_strided_slice %3 {offsets = [0, 76], sizes = [4, 256], strides = [1, 1]} : vector<4x768xf32> to vector<4x256xf32>
    %c11 = arith.constant 11 : index
    %c0_31 = arith.constant 0 : index
    %67 = vector.load %arg2[%c11, %c0_31] : memref<19x256xf32, #tpu.memory_space<vmem>>, vector<1x256xf32>
    %68 = vector.broadcast %67 : vector<1x256xf32> to vector<4x256xf32>
    %69 = arith.mulf %66, %68 : vector<4x256xf32>
    %70 = vector.extract_strided_slice %3 {offsets = [0, 244], sizes = [4, 256], strides = [1, 1]} : vector<4x768xf32> to vector<4x256xf32>
    %c12 = arith.constant 12 : index
    %c0_32 = arith.constant 0 : index
    %71 = vector.load %arg2[%c12, %c0_32] : memref<19x256xf32, #tpu.memory_space<vmem>>, vector<1x256xf32>
    %72 = vector.broadcast %71 : vector<1x256xf32> to vector<4x256xf32>
    %73 = arith.mulf %70, %72 : vector<4x256xf32>
    %74 = vector.extract_strided_slice %3 {offsets = [0, 256], sizes = [4, 256], strides = [1, 1]} : vector<4x768xf32> to vector<4x256xf32>
    %75 = vector.extract_strided_slice %3 {offsets = [0, 268], sizes = [4, 256], strides = [1, 1]} : vector<4x768xf32> to vector<4x256xf32>
    %c14 = arith.constant 14 : index
    %c0_33 = arith.constant 0 : index
    %76 = vector.load %arg2[%c14, %c0_33] : memref<19x256xf32, #tpu.memory_space<vmem>>, vector<1x256xf32>
    %77 = vector.broadcast %76 : vector<1x256xf32> to vector<4x256xf32>
    %78 = arith.mulf %75, %77 : vector<4x256xf32>
    %79 = vector.extract_strided_slice %3 {offsets = [0, 436], sizes = [4, 256], strides = [1, 1]} : vector<4x768xf32> to vector<4x256xf32>
    %c15 = arith.constant 15 : index
    %c0_34 = arith.constant 0 : index
    %80 = vector.load %arg2[%c15, %c0_34] : memref<19x256xf32, #tpu.memory_space<vmem>>, vector<1x256xf32>
    %81 = vector.broadcast %80 : vector<1x256xf32> to vector<4x256xf32>
    %82 = arith.mulf %79, %81 : vector<4x256xf32>
    %83 = vector.extract_strided_slice %3 {offsets = [0, 448], sizes = [4, 256], strides = [1, 1]} : vector<4x768xf32> to vector<4x256xf32>
    %c16 = arith.constant 16 : index
    %c0_35 = arith.constant 0 : index
    %84 = vector.load %arg2[%c16, %c0_35] : memref<19x256xf32, #tpu.memory_space<vmem>>, vector<1x256xf32>
    %85 = vector.broadcast %84 : vector<1x256xf32> to vector<4x256xf32>
    %86 = arith.mulf %83, %85 : vector<4x256xf32>
    %87 = vector.extract_strided_slice %3 {offsets = [0, 460], sizes = [4, 256], strides = [1, 1]} : vector<4x768xf32> to vector<4x256xf32>
    %c17 = arith.constant 17 : index
    %c0_36 = arith.constant 0 : index
    %88 = vector.load %arg2[%c17, %c0_36] : memref<19x256xf32, #tpu.memory_space<vmem>>, vector<1x256xf32>
    %89 = vector.broadcast %88 : vector<1x256xf32> to vector<4x256xf32>
    %90 = arith.mulf %87, %89 : vector<4x256xf32>
    %91 = tpu.concatenate %61, %65, %69, %73, %74, %78, %82, %86, %90 in 0 : vector<4x256xf32>, vector<4x256xf32>, vector<4x256xf32>, vector<4x256xf32>, vector<4x256xf32>, vector<4x256xf32>, vector<4x256xf32>, vector<4x256xf32>, vector<4x256xf32> -> vector<36x256xf32>
    %c0_37 = arith.constant 0 : index
    %c0_38 = arith.constant 0 : index
    %92 = vector.load %arg7[%c0_37, %c0_38] : memref<8x36xf32, #tpu.memory_space<vmem>>, vector<8x36xf32>
    %cst_39 = arith.constant dense<0.000000e+00> : vector<8x256xf32>
    %93 = tpu.matmul %92, %91, %cst_39 {dimension_numbers = #tpu.dot_dimension_numbers<[1], [0], [0], [1], [0, 0, 1, 1], [], []>} : vector<8x36xf32>, vector<36x256xf32>, vector<8x256xf32> -> vector<8x256xf32>
    %c0_40 = arith.constant 0 : index
    %c0_41 = arith.constant 0 : index
    %94 = vector.load %arg8[%c0_40, %c0_41] : memref<8x1xf32, #tpu.memory_space<vmem>>, vector<8x1xf32>
    %95 = vector.broadcast %94 : vector<8x1xf32> to vector<8x256xf32>
    %96 = arith.addf %93, %95 : vector<8x256xf32>
    %cst_42 = arith.constant 0.000000e+00 : f32
    %97 = vector.broadcast %cst_42 : f32 to vector<8x256xf32>
    %98 = arith.maximumf %96, %97 : vector<8x256xf32>
    %c0_43 = arith.constant 0 : index
    %c16_44 = arith.constant 16 : index
    %c0_45 = arith.constant 0 : index
    %99 = vector.load %arg13[%c0_43, %c16_44, %c0_45] : memref<1x40x256xf32, #tpu.memory_space<vmem>>, vector<1x8x256xf32>
    %100 = vector.shape_cast %99 : vector<1x8x256xf32> to vector<8x256xf32>
    %101 = vector.shape_cast %98 : vector<8x256xf32> to vector<1x8x256xf32>
    tpu.vector_store %arg13[%c0_43, %c16_44, %c0_45], %101 {strides = array<i32>} : memref<1x40x256xf32, #tpu.memory_space<vmem>>, vector<1x8x256xf32>,
    %102 = vector.extract_strided_slice %3 {offsets = [0, 256], sizes = [4, 256], strides = [1, 1]} : vector<4x768xf32> to vector<4x256xf32>
    %c0_46 = arith.constant 0 : index
    %c0_47 = arith.constant 0 : index
    %103 = vector.load %arg9[%c0_46, %c0_47] : memref<8x4xf32, #tpu.memory_space<vmem>>, vector<8x4xf32>
    %cst_48 = arith.constant dense<0.000000e+00> : vector<8x256xf32>
    %104 = tpu.matmul %103, %102, %cst_48 {dimension_numbers = #tpu.dot_dimension_numbers<[1], [0], [0], [1], [0, 0, 1, 1], [], []>} : vector<8x4xf32>, vector<4x256xf32>, vector<8x256xf32> -> vector<8x256xf32>
    %c0_49 = arith.constant 0 : index
    %c0_50 = arith.constant 0 : index
    %105 = vector.load %arg10[%c0_49, %c0_50] : memref<8x1xf32, #tpu.memory_space<vmem>>, vector<8x1xf32>
    %106 = vector.broadcast %105 : vector<8x1xf32> to vector<8x256xf32>
    %107 = arith.addf %104, %106 : vector<8x256xf32>
    %cst_51 = arith.constant 0.000000e+00 : f32
    %108 = vector.broadcast %cst_51 : f32 to vector<8x256xf32>
    %109 = arith.maximumf %107, %108 : vector<8x256xf32>
    %c0_52 = arith.constant 0 : index
    %c24 = arith.constant 24 : index
    %c0_53 = arith.constant 0 : index
    %110 = vector.load %arg13[%c0_52, %c24, %c0_53] : memref<1x40x256xf32, #tpu.memory_space<vmem>>, vector<1x8x256xf32>
    %111 = vector.shape_cast %110 : vector<1x8x256xf32> to vector<8x256xf32>
    %112 = vector.shape_cast %109 : vector<8x256xf32> to vector<1x8x256xf32>
    tpu.vector_store %arg13[%c0_52, %c24, %c0_53], %112 {strides = array<i32>} : memref<1x40x256xf32, #tpu.memory_space<vmem>>, vector<1x8x256xf32>,
    %c0_54 = arith.constant 0 : index
    %c0_55 = arith.constant 0 : index
    %113 = vector.load %arg11[%c0_54, %c0_55] : memref<8x4xf32, #tpu.memory_space<vmem>>, vector<8x4xf32>
    %cst_56 = arith.constant dense<0.000000e+00> : vector<8x256xf32>
    %114 = tpu.matmul %113, %1, %cst_56 {dimension_numbers = #tpu.dot_dimension_numbers<[1], [0], [0], [1], [0, 0, 1, 1], [], []>} : vector<8x4xf32>, vector<4x256xf32>, vector<8x256xf32> -> vector<8x256xf32>
    %cst_57 = arith.constant dense<0.000000e+00> : vector<8xf32>
    %115 = vector.multi_reduction <add>, %114, %cst_57 [1] : vector<8x256xf32> to vector<8xf32>
    %116 = vector.shape_cast %115 : vector<8xf32> to vector<8x1xf32>
    %cst_58 = arith.constant 3.906250e-03 : f32
    %117 = vector.broadcast %cst_58 : f32 to vector<8x1xf32>
    %118 = arith.mulf %116, %117 : vector<8x1xf32>
    %c0_59 = arith.constant 0 : index
    %c0_60 = arith.constant 0 : index
    %119 = vector.load %arg12[%c0_59, %c0_60] : memref<8x1xf32, #tpu.memory_space<vmem>>, vector<8x1xf32>
    %120 = arith.addf %118, %119 : vector<8x1xf32>
    %cst_61 = arith.constant 0.000000e+00 : f32
    %121 = vector.broadcast %cst_61 : f32 to vector<8x1xf32>
    %122 = arith.maximumf %120, %121 : vector<8x1xf32>
    %123 = vector.shape_cast %122 : vector<8x1xf32> to vector<8x1xf32>
    %124 = vector.broadcast %123 : vector<8x1xf32> to vector<8x256xf32>
    %c0_62 = arith.constant 0 : index
    %c32 = arith.constant 32 : index
    %c0_63 = arith.constant 0 : index
    %125 = vector.load %arg13[%c0_62, %c32, %c0_63] : memref<1x40x256xf32, #tpu.memory_space<vmem>>, vector<1x8x256xf32>
    %126 = vector.shape_cast %125 : vector<1x8x256xf32> to vector<8x256xf32>
    %127 = vector.shape_cast %124 : vector<8x256xf32> to vector<1x8x256xf32>
    tpu.vector_store %arg13[%c0_62, %c32, %c0_63], %127 {strides = array<i32>} : memref<1x40x256xf32, #tpu.memory_space<vmem>>, vector<1x8x256xf32>,
    return
  }
  func.func @transform_0(%arg0: i32) -> (i32, i32, i32) {
    %c0_i32 = arith.constant 0 : i32
    %c0_i32_0 = arith.constant 0 : i32
    %c0_i32_1 = arith.constant 0 : i32
    return %arg0, %c0_i32, %c0_i32_0 : i32, i32, i32
  }
  func.func @transform_1(%arg0: i32) -> (i32, i32) {
    %c0_i32 = arith.constant 0 : i32
    %c0_i32_0 = arith.constant 0 : i32
    %c0_i32_1 = arith.constant 0 : i32
    return %c0_i32, %c0_i32_0 : i32, i32
  }
  func.func @transform_2(%arg0: i32) -> (i32, i32) {
    %c0_i32 = arith.constant 0 : i32
    %c0_i32_0 = arith.constant 0 : i32
    %c0_i32_1 = arith.constant 0 : i32
    return %c0_i32, %c0_i32_0 : i32, i32
  }
  func.func @transform_3(%arg0: i32) -> (i32, i32) {
    %c0_i32 = arith.constant 0 : i32
    %c0_i32_0 = arith.constant 0 : i32
    %c0_i32_1 = arith.constant 0 : i32
    return %c0_i32, %c0_i32_0 : i32, i32
  }
  func.func @transform_4(%arg0: i32) -> (i32, i32) {
    %c0_i32 = arith.constant 0 : i32
    %c0_i32_0 = arith.constant 0 : i32
    %c0_i32_1 = arith.constant 0 : i32
    return %c0_i32, %c0_i32_0 : i32, i32
  }
  func.func @transform_5(%arg0: i32) -> (i32, i32) {
    %c0_i32 = arith.constant 0 : i32
    %c0_i32_0 = arith.constant 0 : i32
    %c0_i32_1 = arith.constant 0 : i32
    return %c0_i32, %c0_i32_0 : i32, i32
  }
  func.func @transform_6(%arg0: i32) -> (i32, i32) {
    %c0_i32 = arith.constant 0 : i32
    %c0_i32_0 = arith.constant 0 : i32
    %c0_i32_1 = arith.constant 0 : i32
    return %c0_i32, %c0_i32_0 : i32, i32
  }
  func.func @transform_7(%arg0: i32) -> (i32, i32) {
    %c0_i32 = arith.constant 0 : i32
    %c0_i32_0 = arith.constant 0 : i32
    %c0_i32_1 = arith.constant 0 : i32
    return %c0_i32, %c0_i32_0 : i32, i32
  }
  func.func @transform_8(%arg0: i32) -> (i32, i32) {
    %c0_i32 = arith.constant 0 : i32
    %c0_i32_0 = arith.constant 0 : i32
    %c0_i32_1 = arith.constant 0 : i32
    return %c0_i32, %c0_i32_0 : i32, i32
  }
  func.func @transform_9(%arg0: i32) -> (i32, i32) {
    %c0_i32 = arith.constant 0 : i32
    %c0_i32_0 = arith.constant 0 : i32
    %c0_i32_1 = arith.constant 0 : i32
    return %c0_i32, %c0_i32_0 : i32, i32
  }
  func.func @transform_10(%arg0: i32) -> (i32, i32) {
    %c0_i32 = arith.constant 0 : i32
    %c0_i32_0 = arith.constant 0 : i32
    %c0_i32_1 = arith.constant 0 : i32
    return %c0_i32, %c0_i32_0 : i32, i32
  }
  func.func @transform_11(%arg0: i32) -> (i32, i32) {
    %c0_i32 = arith.constant 0 : i32
    %c0_i32_0 = arith.constant 0 : i32
    %c0_i32_1 = arith.constant 0 : i32
    return %c0_i32, %c0_i32_0 : i32, i32
  }
  func.func @transform_12(%arg0: i32) -> (i32, i32, i32) {
    %c0_i32 = arith.constant 0 : i32
    %c0_i32_0 = arith.constant 0 : i32
    %c0_i32_1 = arith.constant 0 : i32
    return %arg0, %c0_i32, %c0_i32_0 : i32, i32, i32
  }
}

</mosaic_0001>

<llo_original>
// kernel: tpu_custom_call.1
$region0: #{tpu_custom_call.1}
  #allocation0 [shape = 'u32[]', space=smem, size = 0x4, offset = 0x4, fixed_abs, tag = 'smem constant byte address 0x4 - core index']
  #allocation1 [shape = 'u32[144,128]{1,0:T(1,128)}', space=vmem, size = 0x12000, scoped, tag = 'internal scratch']
  %s0 = inlined_call_operand.vmem [shape: f32[2,4,256], index: 0, kind: input, shape index: {}]
  %s1 = inlined_call_operand.vmem [shape: f32[19,256], index: 1, kind: input, shape index: {}]
  %s2 = inlined_call_operand.vmem [shape: f32[8,4], index: 2, kind: input, shape index: {}]
  %s3 = inlined_call_operand.vmem [shape: f32[8,1], index: 3, kind: input, shape index: {}]
  %s4 = inlined_call_operand.vmem [shape: f32[8,36], index: 4, kind: input, shape index: {}]
  %s5 = inlined_call_operand.vmem [shape: f32[8,1], index: 5, kind: input, shape index: {}]
  %s6 = inlined_call_operand.vmem [shape: f32[8,36], index: 6, kind: input, shape index: {}]
  %s7 = inlined_call_operand.vmem [shape: f32[8,1], index: 7, kind: input, shape index: {}]
  %s8 = inlined_call_operand.vmem [shape: f32[8,4], index: 8, kind: input, shape index: {}]
  %s9 = inlined_call_operand.vmem [shape: f32[8,1], index: 9, kind: input, shape index: {}]
  %s10 = inlined_call_operand.vmem [shape: f32[8,4], index: 10, kind: input, shape index: {}]
  %s11 = inlined_call_operand.vmem [shape: f32[8,1], index: 11, kind: input, shape index: {}]
  %s12 = inlined_call_operand.hbm [shape: f32[2,40,256], index: 12, kind: output, shape index: {}]
  %s13 = sld [smem:[#allocation0]]
  $region81: #{tpu_custom_call.1} parent=0
    _
  %s15 = ssub.s32 1, %s13
  %s16 = scalar_select 0, %s15, %s13
  $region1: #{tpu_custom_call.1} parent=0
    #allocation2 [shape = 'u8[81920]{0}', space=vmem, size = 0x14000, scoped, tag = 'output window, operand 0']
    #allocation3 [shape = 's32[2]{0}', space=sflag, size = 0x8, scoped, tag = 'scoped memory for tpu_custom_call.1']
    %17 = vsyncpa [#allocation3], 0
    %s18 = scalar_lea.sflag [#allocation3], 1
    %19 = vsyncpa %s18, 0
    loop: start=0, step=1, limit=4
    $region2: #{tpu_custom_call.1} parent=1 // loop_pre_header
      _
    $region3: #{tpu_custom_call.1} parent=1 // loop_header
      %s21 = sphi 0, %s25
      %p22 = scmp.ge.s32.totalorder %s21, 4
      %s31 = sphi 0, %s33
      %s34 = sphi 0, %s31
      %s35 = sphi 0, %s34
      %s51 = sphi 0, %s35
      %s55 = sphi 0, %s55
      %s57 = sphi 0, %s55
      %s58 = sphi 0, %s57
      %s72 = sphi 0, %s58
      %s76 = sphi 0, %s76
      %s78 = sphi 0, %s76
      %s79 = sphi 0, %s78
      %s93 = sphi 0, %s79
      %s97 = sphi 0, %s97
      %s99 = sphi 0, %s97
      %s100 = sphi 0, %s99
      %s114 = sphi 0, %s100
      %s118 = sphi 0, %s118
      %s120 = sphi 0, %s118
      %s121 = sphi 0, %s120
      %s135 = sphi 0, %s121
      %s139 = sphi 0, %s139
      %s141 = sphi 0, %s139
      %s142 = sphi 0, %s141
      %s156 = sphi 0, %s142
      %s160 = sphi 0, %s160
      %s162 = sphi 0, %s160
      %s163 = sphi 0, %s162
      %s177 = sphi 0, %s163
      %s181 = sphi 0, %s181
      %s183 = sphi 0, %s181
      %s184 = sphi 0, %s183
      %s198 = sphi 0, %s184
      %s202 = sphi 0, %s202
      %s204 = sphi 0, %s202
      %s205 = sphi 0, %s204
      %s219 = sphi 0, %s205
      %s223 = sphi 0, %s223
      %s225 = sphi 0, %s223
      %s226 = sphi 0, %s225
      %s240 = sphi 0, %s226
      %s244 = sphi 0, %s244
      %s246 = sphi 0, %s244
      %s247 = sphi 0, %s246
      %s261 = sphi 0, %s247
      %s265 = sphi 0, %s265
      %s267 = sphi 0, %s265
      %s268 = sphi 0, %s267
      %s282 = sphi 0, %s268
      %s288 = sphi 0, %s290
      %s291 = sphi 0, %s288
      %s292 = sphi 0, %s291
      %s308 = sphi 0, %s292
    $region4: #{tpu_custom_call.1} parent=1 // loop_header_branch
      %24 = sbr.rel (%p22) target = $region8
    $region5: #{tpu_custom_call.1} parent=1 // loop_body
      %s26 = ssub.s32 %s21, 1
      %s27 = ssub.s32 %s21, 2
      %s28 = sadd.s32 %s21, 1
      %s29 = ssub.s32 %s21, %s28
      %p30 = scmp.eq.s32.totalorder %s29, 0
      %s32 = sadd.s32 %s31, 1
      %s33 = scalar_select %p30, %s31, %s32
      %p36 = pneg %p30
      %p37 = scmp.eq.s32.totalorder %s21, 1
      %p38 = por %p36, %p37
      %p39 = scmp.ne.s32.totalorder %s31, %s34
      %p40 = scmp.eq.s32.totalorder %s21, 0
      %p41 = por %p39, %p40
      %p42 = scmp.ne.s32.totalorder %s31, %s34
      %p43 = scmp.eq.s32.totalorder %s26, 1
      %p44 = por %p42, %p43
      %p45 = scmp.ne.s32.totalorder %s34, %s35
      %p46 = scmp.eq.s32.totalorder %s26, 0
      %p47 = por %p45, %p46
      %p48 = scmp.ne.s32.totalorder %s34, %s35
      %p49 = scmp.eq.s32.totalorder %s27, 1
      %p50 = por %p48, %p49
      %p52 = scmp.ne.s32.totalorder %s35, %s51
      %p53 = scmp.eq.s32.totalorder %s27, 0
      %p54 = por %p52, %p53
      %s56 = sadd.s32 %s55, 1
      %p59 = scmp.eq.s32.totalorder %s21, 1
      %p60 = scmp.ne.s32.totalorder %s55, %s57
      %p61 = scmp.eq.s32.totalorder %s21, 0
      %p62 = por %p60, %p61
      %p63 = scmp.ne.s32.totalorder %s55, %s57
      %p64 = scmp.eq.s32.totalorder %s26, 1
      %p65 = por %p63, %p64
      %p66 = scmp.ne.s32.totalorder %s57, %s58
      %p67 = scmp.eq.s32.totalorder %s26, 0
      %p68 = por %p66, %p67
      %p69 = scmp.ne.s32.totalorder %s57, %s58
      %p70 = scmp.eq.s32.totalorder %s27, 1
      %p71 = por %p69, %p70
      %p73 = scmp.ne.s32.totalorder %s58, %s72
      %p74 = scmp.eq.s32.totalorder %s27, 0
      %p75 = por %p73, %p74
      %s77 = sadd.s32 %s76, 1
      %p80 = scmp.eq.s32.totalorder %s21, 1
      %p81 = scmp.ne.s32.totalorder %s76, %s78
      %p82 = scmp.eq.s32.totalorder %s21, 0
      %p83 = por %p81, %p82
      %p84 = scmp.ne.s32.totalorder %s76, %s78
      %p85 = scmp.eq.s32.totalorder %s26, 1
      %p86 = por %p84, %p85
      %p87 = scmp.ne.s32.totalorder %s78, %s79
      %p88 = scmp.eq.s32.totalorder %s26, 0
      %p89 = por %p87, %p88
      %p90 = scmp.ne.s32.totalorder %s78, %s79
      %p91 = scmp.eq.s32.totalorder %s27, 1
      %p92 = por %p90, %p91
      %p94 = scmp.ne.s32.totalorder %s79, %s93
      %p95 = scmp.eq.s32.totalorder %s27, 0
      %p96 = por %p94, %p95
      %s98 = sadd.s32 %s97, 1
      %p101 = scmp.eq.s32.totalorder %s21, 1
      %p102 = scmp.ne.s32.totalorder %s97, %s99
      %p103 = scmp.eq.s32.totalorder %s21, 0
      %p104 = por %p102, %p103
      %p105 = scmp.ne.s32.totalorder %s97, %s99
      %p106 = scmp.eq.s32.totalorder %s26, 1
      %p107 = por %p105, %p106
      %p108 = scmp.ne.s32.totalorder %s99, %s100
      %p109 = scmp.eq.s32.totalorder %s26, 0
      %p110 = por %p108, %p109
      %p111 = scmp.ne.s32.totalorder %s99, %s100
      %p112 = scmp.eq.s32.totalorder %s27, 1
      %p113 = por %p111, %p112
      %p115 = scmp.ne.s32.totalorder %s100, %s114
      %p116 = scmp.eq.s32.totalorder %s27, 0
      %p117 = por %p115, %p116
      %s119 = sadd.s32 %s118, 1
      %p122 = scmp.eq.s32.totalorder %s21, 1
      %p123 = scmp.ne.s32.totalorder %s118, %s120
      %p124 = scmp.eq.s32.totalorder %s21, 0
      %p125 = por %p123, %p124
      %p126 = scmp.ne.s32.totalorder %s118, %s120
      %p127 = scmp.eq.s32.totalorder %s26, 1
      %p128 = por %p126, %p127
      %p129 = scmp.ne.s32.totalorder %s120, %s121
      %p130 = scmp.eq.s32.totalorder %s26, 0
      %p131 = por %p129, %p130
      %p132 = scmp.ne.s32.totalorder %s120, %s121
      %p133 = scmp.eq.s32.totalorder %s27, 1
      %p134 = por %p132, %p133
      %p136 = scmp.ne.s32.totalorder %s121, %s135
      %p137 = scmp.eq.s32.totalorder %s27, 0
      %p138 = por %p136, %p137
      %s140 = sadd.s32 %s139, 1
      %p143 = scmp.eq.s32.totalorder %s21, 1
      %p144 = scmp.ne.s32.totalorder %s139, %s141
      %p145 = scmp.eq.s32.totalorder %s21, 0
      %p146 = por %p144, %p145
      %p147 = scmp.ne.s32.totalorder %s139, %s141
      %p148 = scmp.eq.s32.totalorder %s26, 1
      %p149 = por %p147, %p148
      %p150 = scmp.ne.s32.totalorder %s141, %s142
      %p151 = scmp.eq.s32.totalorder %s26, 0
      %p152 = por %p150, %p151
      %p153 = scmp.ne.s32.totalorder %s141, %s142
      %p154 = scmp.eq.s32.totalorder %s27, 1
      %p155 = por %p153, %p154
      %p157 = scmp.ne.s32.totalorder %s142, %s156
      %p158 = scmp.eq.s32.totalorder %s27, 0
      %p159 = por %p157, %p158
      %s161 = sadd.s32 %s160, 1
      %p164 = scmp.eq.s32.totalorder %s21, 1
      %p165 = scmp.ne.s32.totalorder %s160, %s162
      %p166 = scmp.eq.s32.totalorder %s21, 0
      %p167 = por %p165, %p166
      %p168 = scmp.ne.s32.totalorder %s160, %s162
      %p169 = scmp.eq.s32.totalorder %s26, 1
      %p170 = por %p168, %p169
      %p171 = scmp.ne.s32.totalorder %s162, %s163
      %p172 = scmp.eq.s32.totalorder %s26, 0
      %p173 = por %p171, %p172
      %p174 = scmp.ne.s32.totalorder %s162, %s163
      %p175 = scmp.eq.s32.totalorder %s27, 1
      %p176 = por %p174, %p175
      %p178 = scmp.ne.s32.totalorder %s163, %s177
      %p179 = scmp.eq.s32.totalorder %s27, 0
      %p180 = por %p178, %p179
      %s182 = sadd.s32 %s181, 1
      %p185 = scmp.eq.s32.totalorder %s21, 1
      %p186 = scmp.ne.s32.totalorder %s181, %s183
      %p187 = scmp.eq.s32.totalorder %s21, 0
      %p188 = por %p186, %p187
      %p189 = scmp.ne.s32.totalorder %s181, %s183
      %p190 = scmp.eq.s32.totalorder %s26, 1
      %p191 = por %p189, %p190
      %p192 = scmp.ne.s32.totalorder %s183, %s184
      %p193 = scmp.eq.s32.totalorder %s26, 0
      %p194 = por %p192, %p193
      %p195 = scmp.ne.s32.totalorder %s183, %s184
      %p196 = scmp.eq.s32.totalorder %s27, 1
      %p197 = por %p195, %p196
      %p199 = scmp.ne.s32.totalorder %s184, %s198
      %p200 = scmp.eq.s32.totalorder %s27, 0
      %p201 = por %p199, %p200
      %s203 = sadd.s32 %s202, 1
      %p206 = scmp.eq.s32.totalorder %s21, 1
      %p207 = scmp.ne.s32.totalorder %s202, %s204
      %p208 = scmp.eq.s32.totalorder %s21, 0
      %p209 = por %p207, %p208
      %p210 = scmp.ne.s32.totalorder %s202, %s204
      %p211 = scmp.eq.s32.totalorder %s26, 1
      %p212 = por %p210, %p211
      %p213 = scmp.ne.s32.totalorder %s204, %s205
      %p214 = scmp.eq.s32.totalorder %s26, 0
      %p215 = por %p213, %p214
      %p216 = scmp.ne.s32.totalorder %s204, %s205
      %p217 = scmp.eq.s32.totalorder %s27, 1
      %p218 = por %p216, %p217
      %p220 = scmp.ne.s32.totalorder %s205, %s219
      %p221 = scmp.eq.s32.totalorder %s27, 0
      %p222 = por %p220, %p221
      %s224 = sadd.s32 %s223, 1
      %p227 = scmp.eq.s32.totalorder %s21, 1
      %p228 = scmp.ne.s32.totalorder %s223, %s225
      %p229 = scmp.eq.s32.totalorder %s21, 0
      %p230 = por %p228, %p229
      %p231 = scmp.ne.s32.totalorder %s223, %s225
      %p232 = scmp.eq.s32.totalorder %s26, 1
      %p233 = por %p231, %p232
      %p234 = scmp.ne.s32.totalorder %s225, %s226
      %p235 = scmp.eq.s32.totalorder %s26, 0
      %p236 = por %p234, %p235
      %p237 = scmp.ne.s32.totalorder %s225, %s226
      %p238 = scmp.eq.s32.totalorder %s27, 1
      %p239 = por %p237, %p238
      %p241 = scmp.ne.s32.totalorder %s226, %s240
      %p242 = scmp.eq.s32.totalorder %s27, 0
      %p243 = por %p241, %p242
      %s245 = sadd.s32 %s244, 1
      %p248 = scmp.eq.s32.totalorder %s21, 1
      %p249 = scmp.ne.s32.totalorder %s244, %s246
      %p250 = scmp.eq.s32.totalorder %s21, 0
      %p251 = por %p249, %p250
      %p252 = scmp.ne.s32.totalorder %s244, %s246
      %p253 = scmp.eq.s32.totalorder %s26, 1
      %p254 = por %p252, %p253
      %p255 = scmp.ne.s32.totalorder %s246, %s247
      %p256 = scmp.eq.s32.totalorder %s26, 0
      %p257 = por %p255, %p256
      %p258 = scmp.ne.s32.totalorder %s246, %s247
      %p259 = scmp.eq.s32.totalorder %s27, 1
      %p260 = por %p258, %p259
      %p262 = scmp.ne.s32.totalorder %s247, %s261
      %p263 = scmp.eq.s32.totalorder %s27, 0
      %p264 = por %p262, %p263
      %s266 = sadd.s32 %s265, 1
      %p269 = scmp.eq.s32.totalorder %s21, 1
      %p270 = scmp.ne.s32.totalorder %s265, %s267
      %p271 = scmp.eq.s32.totalorder %s21, 0
      %p272 = por %p270, %p271
      %p273 = scmp.ne.s32.totalorder %s265, %s267
      %p274 = scmp.eq.s32.totalorder %s26, 1
      %p275 = por %p273, %p274
      %p276 = scmp.ne.s32.totalorder %s267, %s268
      %p277 = scmp.eq.s32.totalorder %s26, 0
      %p278 = por %p276, %p277
      %p279 = scmp.ne.s32.totalorder %s267, %s268
      %p280 = scmp.eq.s32.totalorder %s27, 1
      %p281 = por %p279, %p280
      %p283 = scmp.ne.s32.totalorder %s268, %s282
      %p284 = scmp.eq.s32.totalorder %s27, 0
      %p285 = por %p283, %p284
      %s286 = ssub.s32 %s21, %s28
      %p287 = scmp.eq.s32.totalorder %s286, 0
      %s289 = sadd.s32 %s288, 1
      %s290 = scalar_select %p287, %s288, %s289
      %p293 = pneg %p287
      %p294 = scmp.eq.s32.totalorder %s21, 1
      %p295 = por %p293, %p294
      %p296 = scmp.ne.s32.totalorder %s288, %s291
      %p297 = scmp.eq.s32.totalorder %s21, 0
      %p298 = por %p296, %p297
      %p299 = scmp.ne.s32.totalorder %s288, %s291
      %p300 = scmp.eq.s32.totalorder %s26, 1
      %p301 = por %p299, %p300
      %p302 = scmp.ne.s32.totalorder %s291, %s292
      %p303 = scmp.eq.s32.totalorder %s26, 0
      %p304 = por %p302, %p303
      %p305 = scmp.ne.s32.totalorder %s291, %s292
      %p306 = scmp.eq.s32.totalorder %s27, 1
      %p307 = por %p305, %p306
      %p309 = scmp.ne.s32.totalorder %s292, %s308
      %p310 = scmp.eq.s32.totalorder %s27, 0
      %p311 = por %p309, %p310
      %p312 = scmp.le.s32.totalorder 1, %s21
      %p313 = scmp.lt.s32.totalorder %s21, 3
      %p314 = pnand %p312, %p313
      %p315 = pneg %p314
      // Predicated region
      $region9: #{tpu_custom_call.1} parent=5 // pred_check
        _
      $region10: #{tpu_custom_call.1} parent=5 // pred_check_branch
        %317 = sbr.rel (%p314) target = $region12
      $region11: #{tpu_custom_call.1} parent=5 // pred_region
        %s318 = ssub.s32 %s21, 1
        // Predicated region
        $region13: #{tpu_custom_call.1} parent=11 // pred_check
          %p319 = pneg %p68
        $region14: #{tpu_custom_call.1} parent=11 // pred_check_branch
          %321 = sbr.rel (%p319) target = $region16
        $region15: #{tpu_custom_call.1} parent=11 // pred_region
          _
        $region16: #{tpu_custom_call.1} parent=11 // pred_fallthru
          _
        // Predicated region
        $region17: #{tpu_custom_call.1} parent=11 // pred_check
          %p322 = pneg %p89
        $region18: #{tpu_custom_call.1} parent=11 // pred_check_branch
          %324 = sbr.rel (%p322) target = $region20
        $region19: #{tpu_custom_call.1} parent=11 // pred_region
          _
        $region20: #{tpu_custom_call.1} parent=11 // pred_fallthru
          _
        // Predicated region
        $region21: #{tpu_custom_call.1} parent=11 // pred_check
          %p325 = pneg %p110
        $region22: #{tpu_custom_call.1} parent=11 // pred_check_branch
          %327 = sbr.rel (%p325) target = $region24
        $region23: #{tpu_custom_call.1} parent=11 // pred_region
          _
        $region24: #{tpu_custom_call.1} parent=11 // pred_fallthru
          _
        // Predicated region
        $region25: #{tpu_custom_call.1} parent=11 // pred_check
          %p328 = pneg %p131
        $region26: #{tpu_custom_call.1} parent=11 // pred_check_branch
          %330 = sbr.rel (%p328) target = $region28
        $region27: #{tpu_custom_call.1} parent=11 // pred_region
          _
        $region28: #{tpu_custom_call.1} parent=11 // pred_fallthru
          _
        // Predicated region
        $region29: #{tpu_custom_call.1} parent=11 // pred_check
          %p331 = pneg %p152
        $region30: #{tpu_custom_call.1} parent=11 // pred_check_branch
          %333 = sbr.rel (%p331) target = $region32
        $region31: #{tpu_custom_call.1} parent=11 // pred_region
          _
        $region32: #{tpu_custom_call.1} parent=11 // pred_fallthru
          _
        // Predicated region
        $region33: #{tpu_custom_call.1} parent=11 // pred_check
          %p334 = pneg %p173
        $region34: #{tpu_custom_call.1} parent=11 // pred_check_branch
          %336 = sbr.rel (%p334) target = $region36
        $region35: #{tpu_custom_call.1} parent=11 // pred_region
          _
        $region36: #{tpu_custom_call.1} parent=11 // pred_fallthru
          _
        // Predicated region
        $region37: #{tpu_custom_call.1} parent=11 // pred_check
          %p337 = pneg %p194
        $region38: #{tpu_custom_call.1} parent=11 // pred_check_branch
          %339 = sbr.rel (%p337) target = $region40
        $region39: #{tpu_custom_call.1} parent=11 // pred_region
          _
        $region40: #{tpu_custom_call.1} parent=11 // pred_fallthru
          _
        // Predicated region
        $region41: #{tpu_custom_call.1} parent=11 // pred_check
          %p340 = pneg %p215
        $region42: #{tpu_custom_call.1} parent=11 // pred_check_branch
          %342 = sbr.rel (%p340) target = $region44
        $region43: #{tpu_custom_call.1} parent=11 // pred_region
          _
        $region44: #{tpu_custom_call.1} parent=11 // pred_fallthru
          _
        // Predicated region
        $region45: #{tpu_custom_call.1} parent=11 // pred_check
          %p343 = pneg %p236
        $region46: #{tpu_custom_call.1} parent=11 // pred_check_branch
          %345 = sbr.rel (%p343) target = $region48
        $region47: #{tpu_custom_call.1} parent=11 // pred_region
          _
        $region48: #{tpu_custom_call.1} parent=11 // pred_fallthru
          _
        // Predicated region
        $region49: #{tpu_custom_call.1} parent=11 // pred_check
          %p346 = pneg %p257
        $region50: #{tpu_custom_call.1} parent=11 // pred_check_branch
          %348 = sbr.rel (%p346) target = $region52
        $region51: #{tpu_custom_call.1} parent=11 // pred_region
          _
        $region52: #{tpu_custom_call.1} parent=11 // pred_fallthru
          _
        // Predicated region
        $region53: #{tpu_custom_call.1} parent=11 // pred_check
          %p349 = pneg %p278
        $region54: #{tpu_custom_call.1} parent=11 // pred_check_branch
          %351 = sbr.rel (%p349) target = $region56
        $region55: #{tpu_custom_call.1} parent=11 // pred_region
          _
        $region56: #{tpu_custom_call.1} parent=11 // pred_fallthru
          _
      $region12: #{tpu_custom_call.1} parent=5 // pred_fallthru
        _
      %p352 = scmp.lt.s32.totalorder %s21, 2
      // Predicated region
      $region57: #{tpu_custom_call.1} parent=5 // pred_check
        %p353 = pneg %p352
      $region58: #{tpu_custom_call.1} parent=5 // pred_check_branch
        %355 = sbr.rel (%p353) target = $region60
      $region59: #{tpu_custom_call.1} parent=5 // pred_region
        // Predicated region
        $region61: #{tpu_custom_call.1} parent=59 // pred_check
          %p356 = pneg %p41
        $region62: #{tpu_custom_call.1} parent=59 // pred_check_branch
          %358 = sbr.rel (%p356) target = $region64
        $region63: #{tpu_custom_call.1} parent=59 // pred_region
          %p359 = scmp.lt.s32.totalorder %s21, 1
          %s360 = scalar_select %p359, %s21, 1
          %s361 = smul.addr %s360, 2
          %s362 = smul.addr %s361, 4
          %s363 = scalar_lea.vmem %s0, %s362
        $region64: #{tpu_custom_call.1} parent=59 // pred_fallthru
          _
      $region60: #{tpu_custom_call.1} parent=5 // pred_fallthru
        _
      %p364 = scmp.le.s32.totalorder 1, %s21
      %p365 = scmp.lt.s32.totalorder %s21, 3
      %p366 = pnand %p364, %p365
      %p367 = pneg %p366
      // Predicated region
      $region65: #{tpu_custom_call.1} parent=5 // pred_check
        _
      $region66: #{tpu_custom_call.1} parent=5 // pred_check_branch
        %369 = sbr.rel (%p366) target = $region68
      $region67: #{tpu_custom_call.1} parent=5 // pred_region
        %s370 = ssub.s32 %s21, 1
        %p371 = scmp.lt.s32.totalorder %s26, 1
        %s372 = scalar_select %p371, %s26, 1
        %s373 = smul.addr %s372, 2
        %s374 = smul.addr %s373, 4
        %s375 = scalar_lea.vmem %s0, %s374
        %p376 = pneg %p47
        %p377 = pneg %p44
        %p378 = pneg %p68
        %p379 = pneg %p65
        %p380 = pneg %p89
        %p381 = pneg %p86
        %p382 = pneg %p110
        %p383 = pneg %p107
        %p384 = pneg %p131
        %p385 = pneg %p128
        %p386 = pneg %p152
        %p387 = pneg %p149
        %p388 = pneg %p173
        %p389 = pneg %p170
        %p390 = pneg %p194
        %p391 = pneg %p191
        %p392 = pneg %p215
        %p393 = pneg %p212
        %p394 = pneg %p236
        %p395 = pneg %p233
        %p396 = pneg %p257
        %p397 = pneg %p254
        %p398 = pneg %p278
        %p399 = pneg %p275
        %p400 = pneg %p304
        %p401 = pneg %p301
        %s402 = sand.u32 %s291, 1
        %s403 = scalar_lea.sflag [#allocation3], %s402
        %s404 = sand.u32 %s291, 1
        %s405 = smul.addr %s404, 80
        %s406 = scalar_lea.vmem [#allocation2], %s405
        %p407 = scmp.lt.s32.totalorder %s26, 1
        %s408 = scalar_select %p407, %s26, 1
        %s409 = smul.addr %s408, 2
        %s410 = smul.addr %s409, 4
        %s411 = scalar_lea.vmem %s0, %s410
        %v412 = vld [vmem:[%s411] sm:$0xff]
        %v414 = vcombine.high %v412, %v412
        %v416 = vld [vmem:[%s2] sm:$0xff]
        %v417 = vld [vmem:[%s3] sm:$0xff]
        %419 = vset.pattern.permute.xlu0 0
        %420 = vperm.xlu0 %419, %v417
        %v421 = vpop.permute.xlu0 %420
        %vm423 = vcmask 31744
        %v425 = vsel %vm423, %v416, 0
        %vm427 = vcmask 1043456
        %v428 = vsel %vm427, %v412, 0
        %v430 = vsel %vm427, %v414, 0
        %432 = vmatprep.subr.mxu0 0.0
        %433 = vmatpush1.msra.mxu0 0.0
        %434 = vmatprep.subr.mxu0 0.0
        %435 = vmatpush1.msra.mxu0 0.0
        %436 = vmatprep.subr.mxu0 0.0
        %437 = vmatpush1.msra.mxu0 0.0
        %438 = vmatprep.subr.mxu0 0.0
        %439 = vmatpush1.msra.mxu0 0.0
        %440 = vmatprep.subr.mxu0 0.0
        %441 = vmatpush1.msra.mxu0 0.0
        %442 = vmatprep.subr.mxu0 0.0
        %443 = vmatpush1.msra.mxu0 0.0
        %444 = vmatprep.subr.mxu0 0.0
        %445 = vmatpush1.msra.mxu0 0.0
        %446 = vmatprep.subr.mxu0 0.0
        %447 = vmatpush1.msra.mxu0 0.0
        %448 = vmatprep.subr.mxu0 0.0
        %449 = vmatpush1.msra.mxu0 0.0
        %450 = vmatprep.subr.mxu0 0.0
        %451 = vmatpush1.msra.mxu0 0.0
        %452 = vmatprep.subr.mxu0 0.0
        %453 = vmatpush1.msra.mxu0 0.0
        %454 = vmatprep.subr.mxu0 0.0
        %455 = vmatpush1.msra.mxu0 0.0
        %456 = vmatprep.subr.mxu0 0.0
        %457 = vmatpush1.msra.mxu0 0.0
        %458 = vmatprep.subr.mxu0 0.0
        %459 = vmatpush1.msra.mxu0 0.0
        %460 = vmatprep.subr.mxu0 0.0
        %461 = vmatpush1.msra.mxu0 0.0
        %462 = vmatprep.subr.mxu0 %v430
        %463 = vmatpush1.msra.mxu0 %v428
        %464 = vmatprep.subr.mxu0 0.0
        %465 = vmatpush2.msra.mxu0 0.0
        %466 = vmatprep.subr.mxu0 0.0
        %467 = vmatpush2.msra.mxu0 0.0
        %468 = vmatprep.subr.mxu0 0.0
        %469 = vmatpush2.msra.mxu0 0.0
        %470 = vmatprep.subr.mxu0 0.0
        %471 = vmatpush2.msra.mxu0 0.0
        %472 = vmatprep.subr.mxu0 0.0
        %473 = vmatpush2.msra.mxu0 0.0
        %474 = vmatprep.subr.mxu0 0.0
        %475 = vmatpush2.msra.mxu0 0.0
        %476 = vmatprep.subr.mxu0 0.0
        %477 = vmatpush2.msra.mxu0 0.0
        %478 = vmatprep.subr.mxu0 0.0
        %479 = vmatpush2.msra.mxu0 0.0
        %480 = vmatprep.subr.mxu0 0.0
        %481 = vmatpush2.msra.mxu0 0.0
        %482 = vmatprep.subr.mxu0 0.0
        %483 = vmatpush2.msra.mxu0 0.0
        %484 = vmatprep.subr.mxu0 0.0
        %485 = vmatpush2.msra.mxu0 0.0
        %486 = vmatprep.subr.mxu0 0.0
        %487 = vmatpush2.msra.mxu0 0.0
        %488 = vmatprep.subr.mxu0 0.0
        %489 = vmatpush2.msra.mxu0 0.0
        %490 = vmatprep.subr.mxu0 0.0
        %491 = vmatpush2.msra.mxu0 0.0
        %492 = vmatprep.subr.mxu0 0.0
        %493 = vmatpush2.msra.mxu0 0.0
        %494 = vmatprep.subr.mxu0 0.0
        %495 = vmatpush2.msra.mxu0 0.0
        %496 = vmatprep.mubr.f32.mxu0 0.0
        %497 = vmatmul.mubr.f32.gmra.mxu0 %v425
        %v498 = vpop.f32.mrf.mxu0
        %v499 = vadd.f32 %v421, %v498
        %v500 = vpop.f32.mrf.mxu0
        %v501 = vadd.f32 %v421, %v500
        %502 = vdwg.mxu0
        %v503 = vmax.f32 %v499, 0.0
        %v504 = vmax.f32 %v501, 0.0
        %505 = vst [vmem:[%s406] sm:$0xff] %v503
        %506 = vst [vmem:[%s406 + $0x8] sm:$0xff] %v504
        %v507 = vld [vmem:[%s1] ss:$8 sm:$0x3]
        %v509 = vlaneseq
        %v510 = vshrl.u32 %v509, 7
        %v511 = vsub.s32 0, %v510
        %v512 = vrot.slane %v507, %v511
        %v513 = vlaneseq
        %v514 = vshrl.u32 %v513, 7
        %v515 = vsub.s32 1, %v514
        %v516 = vrot.slane %v507, %v515
        %517 = vrot.lane.b32.xlu0 %v512, 26
        %v518 = vpop.permute.xlu0 %517
        %519 = vrot.lane.b32.xlu0 %v516, 26
        %v520 = vpop.permute.xlu0 %519
        %vm521 = vcmask 211968
        %v522 = vsel %vm521, %v518, %v520
        %v526 = vmul.f32 %v518, 0.0
        %v527 = vmul.f32 %v412, %v522
        %v528 = vmul.f32 %v414, %v520
        %s529 = scalar_lea.vmem %s1, 1
        %v530 = vld [vmem:[%s529] ss:$8 sm:$0x3]
        %v532 = vlaneseq
        %v533 = vshrl.u32 %v532, 7
        %v534 = vsub.s32 0, %v533
        %v535 = vrot.slane %v530, %v534
        %v536 = vlaneseq
        %v537 = vshrl.u32 %v536, 7
        %v538 = vsub.s32 1, %v537
        %v539 = vrot.slane %v530, %v538
        %540 = vrot.lane.b32.xlu0 %v535, 32
        %v541 = vpop.permute.xlu0 %540
        %542 = vrot.lane.b32.xlu0 %v539, 32
        %v543 = vpop.permute.xlu0 %542
        %vm544 = vcmask 261120
        %v545 = vsel %vm544, %v541, %v543
        %v549 = vmul.f32 %v541, 0.0
        %v550 = vmul.f32 %v412, %v545
        %v551 = vmul.f32 %v414, %v543
        %s552 = scalar_lea.vmem %s1, 2
        %v553 = vld [vmem:[%s552] ss:$8 sm:$0x3]
        %v555 = vlaneseq
        %v556 = vshrl.u32 %v555, 7
        %v557 = vsub.s32 0, %v556
        %v558 = vrot.slane %v553, %v557
        %v559 = vlaneseq
        %v560 = vshrl.u32 %v559, 7
        %v561 = vsub.s32 1, %v560
        %v562 = vrot.slane %v553, %v561
        %563 = vrot.lane.b32.xlu0 %v558, 38
        %v564 = vpop.permute.xlu0 %563
        %565 = vrot.lane.b32.xlu0 %v562, 38
        %v566 = vpop.permute.xlu0 %565
        %vm567 = vcmask 310272
        %v568 = vsel %vm567, %v564, %v566
        %v572 = vmul.f32 %v564, 0.0
        %v573 = vmul.f32 %v412, %v568
        %v574 = vmul.f32 %v414, %v566
        %s575 = scalar_lea.vmem %s1, 3
        %v576 = vld [vmem:[%s575] ss:$8 sm:$0x3]
        %v578 = vlaneseq
        %v579 = vshrl.u32 %v578, 7
        %v580 = vsub.s32 0, %v579
        %v581 = vrot.slane %v576, %v580
        %v582 = vlaneseq
        %v583 = vshrl.u32 %v582, 7
        %v584 = vsub.s32 1, %v583
        %v585 = vrot.slane %v576, %v584
        %586 = vrot.lane.b32.xlu0 %v581, 122
        %v587 = vpop.permute.xlu0 %586
        %588 = vrot.lane.b32.xlu0 %v585, 122
        %v589 = vpop.permute.xlu0 %588
        %vm590 = vcmask 998400
        %v591 = vsel %vm590, %v587, %v589
        %v595 = vmul.f32 %v587, 0.0
        %v596 = vmul.f32 %v412, %v591
        %v597 = vmul.f32 %v414, %v589
        %s598 = scalar_lea.vmem %s1, 5
        %v599 = vld [vmem:[%s598] ss:$8 sm:$0x3]
        %v601 = vlaneseq
        %v602 = vshrl.u32 %v601, 7
        %v603 = vsub.s32 0, %v602
        %v604 = vrot.slane %v599, %v603
        %v605 = vlaneseq
        %v606 = vshrl.u32 %v605, 7
        %v607 = vsub.s32 1, %v606
        %v608 = vrot.slane %v599, %v607
        %609 = vrot.lane.b32.xlu0 %v604, 6
        %v610 = vpop.permute.xlu0 %609
        %611 = vrot.lane.b32.xlu0 %v608, 6
        %v612 = vpop.permute.xlu0 %611
        %vm613 = vcmask 48128
        %v614 = vsel %vm613, %v610, %v612
        %v618 = vmul.f32 %v412, %v610
        %v619 = vmul.f32 %v414, %v614
        %v620 = vmul.f32 %v612, 0.0
        %s621 = scalar_lea.vmem %s1, 6
        %v622 = vld [vmem:[%s621] ss:$8 sm:$0x3]
        %v624 = vlaneseq
        %v625 = vshrl.u32 %v624, 7
        %v626 = vsub.s32 0, %v625
        %v627 = vrot.slane %v622, %v626
        %v628 = vlaneseq
        %v629 = vshrl.u32 %v628, 7
        %v630 = vsub.s32 1, %v629
        %v631 = vrot.slane %v622, %v630
        %632 = vrot.lane.b32.xlu0 %v627, 90
        %v633 = vpop.permute.xlu0 %632
        %634 = vrot.lane.b32.xlu0 %v631, 90
        %v635 = vpop.permute.xlu0 %634
        %vm636 = vcmask 736256
        %v637 = vsel %vm636, %v633, %v635
        %v641 = vmul.f32 %v412, %v633
        %v642 = vmul.f32 %v414, %v637
        %v643 = vmul.f32 %v635, 0.0
        %s644 = scalar_lea.vmem %s1, 7
        %v645 = vld [vmem:[%s644] ss:$8 sm:$0x3]
        %v647 = vlaneseq
        %v648 = vshrl.u32 %v647, 7
        %v649 = vsub.s32 0, %v648
        %v650 = vrot.slane %v645, %v649
        %v651 = vlaneseq
        %v652 = vshrl.u32 %v651, 7
        %v653 = vsub.s32 1, %v652
        %v654 = vrot.slane %v645, %v653
        %655 = vrot.lane.b32.xlu0 %v650, 96
        %v656 = vpop.permute.xlu0 %655
        %657 = vrot.lane.b32.xlu0 %v654, 96
        %v658 = vpop.permute.xlu0 %657
        %vm659 = vcmask 785408
        %v660 = vsel %vm659, %v656, %v658
        %v664 = vmul.f32 %v412, %v656
        %v665 = vmul.f32 %v414, %v660
        %v666 = vmul.f32 %v658, 0.0
        %s667 = scalar_lea.vmem %s1, 16
        %v668 = vld [vmem:[%s667] ss:$8 sm:$0x3]
        %v670 = vlaneseq
        %v671 = vshrl.u32 %v670, 7
        %v672 = vsub.s32 0, %v671
        %v673 = vrot.slane %v668, %v672
        %v674 = vlaneseq
        %v675 = vshrl.u32 %v674, 7
        %v676 = vsub.s32 1, %v675
        %v677 = vrot.slane %v668, %v676
        %678 = vrot.lane.b32.xlu0 %v673, 102
        %v679 = vpop.permute.xlu0 %678
        %680 = vrot.lane.b32.xlu0 %v677, 102
        %v681 = vpop.permute.xlu0 %680
        %vm682 = vcmask 834560
        %v683 = vsel %vm682, %v679, %v681
        %v687 = vmul.f32 %v412, %v679
        %v688 = vmul.f32 %v414, %v683
        %v689 = vmul.f32 %v681, 0.0
        %v693 = vrot.slane %v549, 4
        %v694 = vrot.slane %v550, 4
        %v695 = vrot.slane %v551, 4
        %696 = vrot.lane.b32.xlu0 %v693, 122
        %v697 = vpop.permute.xlu0 %696
        %698 = vrot.lane.b32.xlu0 %v694, 122
        %v699 = vpop.permute.xlu0 %698
        %700 = vrot.lane.b32.xlu0 %v695, 122
        %v701 = vpop.permute.xlu0 %700
        %v702 = vsel %vm590, %v697, %v699
        %v703 = vsel %vm590, %v699, %v701
        %710 = vrot.lane.b32.xlu0 %v572, 116
        %v711 = vpop.permute.xlu0 %710
        %712 = vrot.lane.b32.xlu0 %v573, 116
        %v713 = vpop.permute.xlu0 %712
        %714 = vrot.lane.b32.xlu0 %v574, 116
        %v715 = vpop.permute.xlu0 %714
        %vm716 = vcmask 949248
        %v717 = vsel %vm716, %v711, %v713
        %v718 = vsel %vm716, %v713, %v715
        %v725 = vrot.slane %v595, 4
        %v726 = vrot.slane %v596, 4
        %v727 = vrot.slane %v597, 4
        %728 = vrot.lane.b32.xlu0 %v725, 32
        %v729 = vpop.permute.xlu0 %728
        %730 = vrot.lane.b32.xlu0 %v726, 32
        %v731 = vpop.permute.xlu0 %730
        %732 = vrot.lane.b32.xlu0 %v727, 32
        %v733 = vpop.permute.xlu0 %732
        %v734 = vsel %vm544, %v729, %v731
        %v735 = vsel %vm544, %v731, %v733
        %739 = vrot.lane.b32.xlu0 %v412, 26
        %v740 = vpop.permute.xlu0 %739
        %741 = vrot.lane.b32.xlu0 %v414, 26
        %v742 = vpop.permute.xlu0 %741
        %v743 = vsel %vm521, %v740, %v742
        %v750 = vrot.slane %v618, 4
        %v751 = vrot.slane %v619, 4
        %v752 = vrot.slane %v620, 4
        %753 = vrot.lane.b32.xlu0 %v750, 20
        %v754 = vpop.permute.xlu0 %753
        %755 = vrot.lane.b32.xlu0 %v751, 20
        %v756 = vpop.permute.xlu0 %755
        %757 = vrot.lane.b32.xlu0 %v752, 20
        %v758 = vpop.permute.xlu0 %757
        %vm759 = vcmask 162816
        %v760 = vsel %vm759, %v754, %v756
        %v761 = vsel %vm759, %v756, %v758
        %768 = vrot.lane.b32.xlu0 %v641, 64
        %v769 = vpop.permute.xlu0 %768
        %770 = vrot.lane.b32.xlu0 %v642, 64
        %v771 = vpop.permute.xlu0 %770
        %772 = vrot.lane.b32.xlu0 %v643, 64
        %v773 = vpop.permute.xlu0 %772
        %vm774 = vcmask 523264
        %v775 = vsel %vm774, %v769, %v771
        %v776 = vsel %vm774, %v771, %v773
        %v783 = vrot.slane %v664, 4
        %v784 = vrot.slane %v665, 4
        %v785 = vrot.slane %v666, 4
        %786 = vrot.lane.b32.xlu0 %v783, 58
        %v787 = vpop.permute.xlu0 %786
        %788 = vrot.lane.b32.xlu0 %v784, 58
        %v789 = vpop.permute.xlu0 %788
        %790 = vrot.lane.b32.xlu0 %v785, 58
        %v791 = vpop.permute.xlu0 %790
        %vm792 = vcmask 474112
        %v793 = vsel %vm792, %v787, %v789
        %v794 = vsel %vm792, %v789, %v791
        %801 = vrot.lane.b32.xlu0 %v687, 52
        %v802 = vpop.permute.xlu0 %801
        %803 = vrot.lane.b32.xlu0 %v688, 52
        %v804 = vpop.permute.xlu0 %803
        %805 = vrot.lane.b32.xlu0 %v689, 52
        %v806 = vpop.permute.xlu0 %805
        %vm807 = vcmask 424960
        %v808 = vsel %vm807, %v802, %v804
        %v809 = vsel %vm807, %v804, %v806
        %v810 = vsel %vm427, %v526, %v702
        %v811 = vsel %vm427, %v527, %v703
        %v812 = vsel %vm427, %v528, %v701
        %v813 = vsel %vm427, %v717, %v734
        %v814 = vsel %vm427, %v718, %v735
        %v815 = vsel %vm427, %v715, %v733
        %v816 = vsel %vm427, %v740, %v754
        %v817 = vsel %vm427, %v743, %v760
        %v818 = vsel %vm427, %v742, %v761
        %v819 = vsel %vm427, %v775, %v793
        %v820 = vsel %vm427, %v776, %v794
        %v821 = vsel %vm427, %v773, %v791
        %v822 = vld [vmem:[%s4] sm:$0xff]
        %v823 = vld [vmem:[%s5] sm:$0xff]
        %825 = vset.pattern.permute.xlu0 0
        %826 = vperm.xlu0 %825, %v823
        %v827 = vpop.permute.xlu0 %826
        %841 = vrot.lane.b32.xlu0 %v810, 102
        %v842 = vpop.permute.xlu0 %841
        %843 = vrot.lane.b32.xlu0 %v811, 102
        %v844 = vpop.permute.xlu0 %843
        %845 = vrot.lane.b32.xlu0 %v812, 102
        %v846 = vpop.permute.xlu0 %845
        %847 = vrot.lane.b32.xlu0 %v813, 102
        %v848 = vpop.permute.xlu0 %847
        %849 = vrot.lane.b32.xlu0 %v814, 102
        %v850 = vpop.permute.xlu0 %849
        %851 = vrot.lane.b32.xlu0 %v815, 102
        %v852 = vpop.permute.xlu0 %851
        %853 = vrot.lane.b32.xlu0 %v816, 102
        %v854 = vpop.permute.xlu0 %853
        %855 = vrot.lane.b32.xlu0 %v817, 102
        %v856 = vpop.permute.xlu0 %855
        %857 = vrot.lane.b32.xlu0 %v818, 102
        %v858 = vpop.permute.xlu0 %857
        %859 = vrot.lane.b32.xlu0 %v819, 102
        %v860 = vpop.permute.xlu0 %859
        %861 = vrot.lane.b32.xlu0 %v820, 102
        %v862 = vpop.permute.xlu0 %861
        %863 = vrot.lane.b32.xlu0 %v821, 102
        %v864 = vpop.permute.xlu0 %863
        %865 = vrot.lane.b32.xlu0 %v808, 102
        %v866 = vpop.permute.xlu0 %865
        %867 = vrot.lane.b32.xlu0 %v809, 102
        %v868 = vpop.permute.xlu0 %867
        %869 = vrot.lane.b32.xlu0 %v806, 102
        %v870 = vpop.permute.xlu0 %869
        %v871 = vsel %vm682, %v842, %v844
        %v872 = vsel %vm682, %v844, %v846
        %v873 = vsel %vm682, %v848, %v850
        %v874 = vsel %vm682, %v850, %v852
        %v875 = vsel %vm682, %v854, %v856
        %v876 = vsel %vm682, %v856, %v858
        %v877 = vsel %vm682, %v860, %v862
        %v878 = vsel %vm682, %v862, %v864
        %v879 = vsel %vm682, %v866, %v868
        %v880 = vsel %vm682, %v868, %v870
        %vm889 = vcmask 293888
        %v891 = vsel %vm889, %v822, 0
        %v893 = vsel %vm427, %v879, 0
        %v895 = vsel %vm427, %v880, 0
        %897 = vmatprep.subr.mxu0 0.0
        %898 = vmatpush1.msra.mxu0 0.0
        %899 = vmatprep.subr.mxu0 0.0
        %900 = vmatpush1.msra.mxu0 0.0
        %901 = vmatprep.subr.mxu0 0.0
        %902 = vmatpush1.msra.mxu0 0.0
        %903 = vmatprep.subr.mxu0 0.0
        %904 = vmatpush1.msra.mxu0 0.0
        %905 = vmatprep.subr.mxu0 0.0
        %906 = vmatpush1.msra.mxu0 0.0
        %907 = vmatprep.subr.mxu0 0.0
        %908 = vmatpush1.msra.mxu0 0.0
        %909 = vmatprep.subr.mxu0 0.0
        %910 = vmatpush1.msra.mxu0 0.0
        %911 = vmatprep.subr.mxu0 0.0
        %912 = vmatpush1.msra.mxu0 0.0
        %913 = vmatprep.subr.mxu0 0.0
        %914 = vmatpush1.msra.mxu0 0.0
        %915 = vmatprep.subr.mxu0 0.0
        %916 = vmatpush1.msra.mxu0 0.0
        %917 = vmatprep.subr.mxu0 0.0
        %918 = vmatpush1.msra.mxu0 0.0
        %919 = vmatprep.subr.mxu0 %v895
        %920 = vmatpush1.msra.mxu0 %v893
        %921 = vmatprep.subr.mxu0 %v878
        %922 = vmatpush1.msra.mxu0 %v877
        %923 = vmatprep.subr.mxu0 %v876
        %924 = vmatpush1.msra.mxu0 %v875
        %925 = vmatprep.subr.mxu0 %v874
        %926 = vmatpush1.msra.mxu0 %v873
        %927 = vmatprep.subr.mxu0 %v872
        %928 = vmatpush1.msra.mxu0 %v871
        %929 = vmatprep.subr.mxu0 0.0
        %930 = vmatpush2.msra.mxu0 0.0
        %931 = vmatprep.subr.mxu0 0.0
        %932 = vmatpush2.msra.mxu0 0.0
        %933 = vmatprep.subr.mxu0 0.0
        %934 = vmatpush2.msra.mxu0 0.0
        %935 = vmatprep.subr.mxu0 0.0
        %936 = vmatpush2.msra.mxu0 0.0
        %937 = vmatprep.subr.mxu0 0.0
        %938 = vmatpush2.msra.mxu0 0.0
        %939 = vmatprep.subr.mxu0 0.0
        %940 = vmatpush2.msra.mxu0 0.0
        %941 = vmatprep.subr.mxu0 0.0
        %942 = vmatpush2.msra.mxu0 0.0
        %943 = vmatprep.subr.mxu0 0.0
        %944 = vmatpush2.msra.mxu0 0.0
        %945 = vmatprep.subr.mxu0 0.0
        %946 = vmatpush2.msra.mxu0 0.0
        %947 = vmatprep.subr.mxu0 0.0
        %948 = vmatpush2.msra.mxu0 0.0
        %949 = vmatprep.subr.mxu0 0.0
        %950 = vmatpush2.msra.mxu0 0.0
        %951 = vmatprep.subr.mxu0 0.0
        %952 = vmatpush2.msra.mxu0 0.0
        %953 = vmatprep.subr.mxu0 0.0
        %954 = vmatpush2.msra.mxu0 0.0
        %955 = vmatprep.subr.mxu0 0.0
        %956 = vmatpush2.msra.mxu0 0.0
        %957 = vmatprep.subr.mxu0 0.0
        %958 = vmatpush2.msra.mxu0 0.0
        %959 = vmatprep.subr.mxu0 0.0
        %960 = vmatpush2.msra.mxu0 0.0
        %961 = vmatprep.mubr.f32.mxu0 0.0
        %962 = vmatmul.mubr.f32.gmra.mxu0 %v891
        %v963 = vpop.f32.mrf.mxu0
        %v964 = vadd.f32 %v827, %v963
        %v965 = vpop.f32.mrf.mxu0
        %v966 = vadd.f32 %v827, %v965
        %967 = vdwg.mxu0
        %v968 = vmax.f32 %v964, 0.0
        %v969 = vmax.f32 %v966, 0.0
        %970 = vst [vmem:[%s406 + $0x10] sm:$0xff] %v968
        %971 = vst [vmem:[%s406 + $0x18] sm:$0xff] %v969
        %s972 = scalar_lea.vmem %s1, 17
        %v973 = vld [vmem:[%s972] ss:$8 sm:$0x3]
        %v975 = vlaneseq
        %v976 = vshrl.u32 %v975, 7
        %v977 = vsub.s32 0, %v976
        %v978 = vrot.slane %v973, %v977
        %v979 = vlaneseq
        %v980 = vshrl.u32 %v979, 7
        %v981 = vsub.s32 1, %v980
        %v982 = vrot.slane %v973, %v981
        %983 = vrot.lane.b32.xlu0 %v978, 52
        %v984 = vpop.permute.xlu0 %983
        %985 = vrot.lane.b32.xlu0 %v982, 52
        %v986 = vpop.permute.xlu0 %985
        %v987 = vsel %vm807, %v984, %v986
        %v991 = vmul.f32 %v984, 0.0
        %v992 = vmul.f32 %v987, 0.0
        %v993 = vmul.f32 %v412, %v986
        %s994 = scalar_lea.vmem %s1, 18
        %v995 = vld [vmem:[%s994] ss:$8 sm:$0x3]
        %v997 = vlaneseq
        %v998 = vshrl.u32 %v997, 7
        %v999 = vsub.s32 0, %v998
        %v1000 = vrot.slane %v995, %v999
        %v1001 = vlaneseq
        %v1002 = vshrl.u32 %v1001, 7
        %v1003 = vsub.s32 1, %v1002
        %v1004 = vrot.slane %v995, %v1003
        %1005 = vrot.lane.b32.xlu0 %v1000, 64
        %v1006 = vpop.permute.xlu0 %1005
        %1007 = vrot.lane.b32.xlu0 %v1004, 64
        %v1008 = vpop.permute.xlu0 %1007
        %v1009 = vsel %vm774, %v1006, %v1008
        %v1013 = vmul.f32 %v1006, 0.0
        %v1014 = vmul.f32 %v1009, 0.0
        %v1015 = vmul.f32 %v412, %v1008
        %s1016 = scalar_lea.vmem %s1, 19
        %v1017 = vld [vmem:[%s1016] ss:$8 sm:$0x3]
        %v1019 = vlaneseq
        %v1020 = vshrl.u32 %v1019, 7
        %v1021 = vsub.s32 0, %v1020
        %v1022 = vrot.slane %v1017, %v1021
        %v1023 = vlaneseq
        %v1024 = vshrl.u32 %v1023, 7
        %v1025 = vsub.s32 1, %v1024
        %v1026 = vrot.slane %v1017, %v1025
        %1027 = vrot.lane.b32.xlu0 %v1022, 76
        %v1028 = vpop.permute.xlu0 %1027
        %1029 = vrot.lane.b32.xlu0 %v1026, 76
        %v1030 = vpop.permute.xlu0 %1029
        %vm1031 = vcmask 621568
        %v1032 = vsel %vm1031, %v1028, %v1030
        %v1036 = vmul.f32 %v1028, 0.0
        %v1037 = vmul.f32 %v1032, 0.0
        %v1038 = vmul.f32 %v412, %v1030
        %s1039 = scalar_lea.vmem %s1, 20
        %v1040 = vld [vmem:[%s1039] ss:$8 sm:$0x3]
        %v1042 = vlaneseq
        %v1043 = vshrl.u32 %v1042, 7
        %v1044 = vsub.s32 0, %v1043
        %v1045 = vrot.slane %v1040, %v1044
        %v1046 = vlaneseq
        %v1047 = vshrl.u32 %v1046, 7
        %v1048 = vsub.s32 1, %v1047
        %v1049 = vrot.slane %v1040, %v1048
        %1050 = vrot.lane.b32.xlu0 %v1045, 116
        %v1051 = vpop.permute.xlu0 %1050
        %1052 = vrot.lane.b32.xlu0 %v1049, 116
        %v1053 = vpop.permute.xlu0 %1052
        %v1054 = vsel %vm716, %v1051, %v1053
        %v1058 = vmul.f32 %v1051, 0.0
        %v1059 = vmul.f32 %v412, %v1054
        %v1060 = vmul.f32 %v414, %v1053
        %s1061 = scalar_lea.vmem %s1, 22
        %v1062 = vld [vmem:[%s1061] ss:$8 sm:$0x3]
        %v1064 = vlaneseq
        %v1065 = vshrl.u32 %v1064, 7
        %v1066 = vsub.s32 0, %v1065
        %v1067 = vrot.slane %v1062, %v1066
        %v1068 = vlaneseq
        %v1069 = vshrl.u32 %v1068, 7
        %v1070 = vsub.s32 1, %v1069
        %v1071 = vrot.slane %v1062, %v1070
        %1072 = vrot.lane.b32.xlu0 %v1067, 12
        %v1073 = vpop.permute.xlu0 %1072
        %1074 = vrot.lane.b32.xlu0 %v1071, 12
        %v1075 = vpop.permute.xlu0 %1074
        %vm1076 = vcmask 97280
        %v1077 = vsel %vm1076, %v1073, %v1075
        %v1081 = vmul.f32 %v412, %v1073
        %v1082 = vmul.f32 %v414, %v1077
        %v1083 = vmul.f32 %v1075, 0.0
        %s1084 = scalar_lea.vmem %s1, 23
        %v1085 = vld [vmem:[%s1084] ss:$8 sm:$0x3]
        %v1087 = vlaneseq
        %v1088 = vshrl.u32 %v1087, 7
        %v1089 = vsub.s32 0, %v1088
        %v1090 = vrot.slane %v1085, %v1089
        %v1091 = vlaneseq
        %v1092 = vshrl.u32 %v1091, 7
        %v1093 = vsub.s32 1, %v1092
        %v1094 = vrot.slane %v1085, %v1093
        %1095 = vrot.lane.b32.xlu0 %v1090, 52
        %v1096 = vpop.permute.xlu0 %1095
        %1097 = vrot.lane.b32.xlu0 %v1094, 52
        %v1098 = vpop.permute.xlu0 %1097
        %v1099 = vsel %vm807, %v1096, %v1098
        %v1103 = vmul.f32 %v414, %v1096
        %v1104 = vmul.f32 %v1099, 0.0
        %v1105 = vmul.f32 %v1098, 0.0
        %s1106 = scalar_lea.vmem %s1, 32
        %v1107 = vld [vmem:[%s1106] ss:$8 sm:$0x3]
        %v1109 = vlaneseq
        %v1110 = vshrl.u32 %v1109, 7
        %v1111 = vsub.s32 0, %v1110
        %v1112 = vrot.slane %v1107, %v1111
        %v1113 = vlaneseq
        %v1114 = vshrl.u32 %v1113, 7
        %v1115 = vsub.s32 1, %v1114
        %v1116 = vrot.slane %v1107, %v1115
        %1117 = vrot.lane.b32.xlu0 %v1112, 64
        %v1118 = vpop.permute.xlu0 %1117
        %1119 = vrot.lane.b32.xlu0 %v1116, 64
        %v1120 = vpop.permute.xlu0 %1119
        %v1121 = vsel %vm774, %v1118, %v1120
        %v1125 = vmul.f32 %v414, %v1118
        %v1126 = vmul.f32 %v1121, 0.0
        %v1127 = vmul.f32 %v1120, 0.0
        %s1128 = scalar_lea.vmem %s1, 33
        %v1129 = vld [vmem:[%s1128] ss:$8 sm:$0x3]
        %v1131 = vlaneseq
        %v1132 = vshrl.u32 %v1131, 7
        %v1133 = vsub.s32 0, %v1132
        %v1134 = vrot.slane %v1129, %v1133
        %v1135 = vlaneseq
        %v1136 = vshrl.u32 %v1135, 7
        %v1137 = vsub.s32 1, %v1136
        %v1138 = vrot.slane %v1129, %v1137
        %1139 = vrot.lane.b32.xlu0 %v1134, 76
        %v1140 = vpop.permute.xlu0 %1139
        %1141 = vrot.lane.b32.xlu0 %v1138, 76
        %v1142 = vpop.permute.xlu0 %1141
        %v1143 = vsel %vm1031, %v1140, %v1142
        %v1147 = vmul.f32 %v414, %v1140
        %v1148 = vmul.f32 %v1143, 0.0
        %v1149 = vmul.f32 %v1142, 0.0
        %v1153 = vrot.slane %v1013, 4
        %v1154 = vrot.slane %v1014, 4
        %v1155 = vrot.slane %v1015, 4
        %1156 = vrot.lane.b32.xlu0 %v1153, 116
        %v1157 = vpop.permute.xlu0 %1156
        %1158 = vrot.lane.b32.xlu0 %v1154, 116
        %v1159 = vpop.permute.xlu0 %1158
        %1160 = vrot.lane.b32.xlu0 %v1155, 116
        %v1161 = vpop.permute.xlu0 %1160
        %v1162 = vsel %vm716, %v1157, %v1159
        %v1163 = vsel %vm716, %v1159, %v1161
        %1170 = vrot.lane.b32.xlu0 %v1036, 104
        %v1171 = vpop.permute.xlu0 %1170
        %1172 = vrot.lane.b32.xlu0 %v1037, 104
        %v1173 = vpop.permute.xlu0 %1172
        %1174 = vrot.lane.b32.xlu0 %v1038, 104
        %v1175 = vpop.permute.xlu0 %1174
        %vm1176 = vcmask 850944
        %v1177 = vsel %vm1176, %v1171, %v1173
        %v1178 = vsel %vm1176, %v1173, %v1175
        %v1185 = vrot.slane %v1058, 4
        %v1186 = vrot.slane %v1059, 4
        %v1187 = vrot.slane %v1060, 4
        %1188 = vrot.lane.b32.xlu0 %v1185, 64
        %v1189 = vpop.permute.xlu0 %1188
        %1190 = vrot.lane.b32.xlu0 %v1186, 64
        %v1191 = vpop.permute.xlu0 %1190
        %1192 = vrot.lane.b32.xlu0 %v1187, 64
        %v1193 = vpop.permute.xlu0 %1192
        %v1194 = vsel %vm774, %v1189, %v1191
        %v1195 = vsel %vm774, %v1191, %v1193
        %1199 = vrot.lane.b32.xlu0 %v412, 52
        %v1200 = vpop.permute.xlu0 %1199
        %1201 = vrot.lane.b32.xlu0 %v414, 52
        %v1202 = vpop.permute.xlu0 %1201
        %v1203 = vsel %vm807, %v1200, %v1202
        %v1210 = vrot.slane %v1081, 4
        %v1211 = vrot.slane %v1082, 4
        %v1212 = vrot.slane %v1083, 4
        %1213 = vrot.lane.b32.xlu0 %v1210, 40
        %v1214 = vpop.permute.xlu0 %1213
        %1215 = vrot.lane.b32.xlu0 %v1211, 40
        %v1216 = vpop.permute.xlu0 %1215
        %1217 = vrot.lane.b32.xlu0 %v1212, 40
        %v1218 = vpop.permute.xlu0 %1217
        %vm1219 = vcmask 326656
        %v1220 = vsel %vm1219, %v1214, %v1216
        %v1221 = vsel %vm1219, %v1216, %v1218
        %v1228 = vrot.slane %v1125, 4
        %v1229 = vrot.slane %v1126, 4
        %v1230 = vrot.slane %v1127, 4
        %1231 = vrot.lane.b32.xlu0 %v1228, 116
        %v1232 = vpop.permute.xlu0 %1231
        %1233 = vrot.lane.b32.xlu0 %v1229, 116
        %v1234 = vpop.permute.xlu0 %1233
        %1235 = vrot.lane.b32.xlu0 %v1230, 116
        %v1236 = vpop.permute.xlu0 %1235
        %v1237 = vsel %vm716, %v1232, %v1234
        %v1238 = vsel %vm716, %v1234, %v1236
        %1245 = vrot.lane.b32.xlu0 %v1147, 104
        %v1246 = vpop.permute.xlu0 %1245
        %1247 = vrot.lane.b32.xlu0 %v1148, 104
        %v1248 = vpop.permute.xlu0 %1247
        %1249 = vrot.lane.b32.xlu0 %v1149, 104
        %v1250 = vpop.permute.xlu0 %1249
        %v1251 = vsel %vm1176, %v1246, %v1248
        %v1252 = vsel %vm1176, %v1248, %v1250
        %v1253 = vsel %vm427, %v991, %v1162
        %v1254 = vsel %vm427, %v992, %v1163
        %v1255 = vsel %vm427, %v993, %v1161
        %v1256 = vsel %vm427, %v1177, %v1194
        %v1257 = vsel %vm427, %v1178, %v1195
        %v1258 = vsel %vm427, %v1175, %v1193
        %v1259 = vsel %vm427, %v1200, %v1214
        %v1260 = vsel %vm427, %v1203, %v1220
        %v1261 = vsel %vm427, %v1202, %v1221
        %v1262 = vsel %vm427, %v1103, %v1237
        %v1263 = vsel %vm427, %v1104, %v1238
        %v1264 = vsel %vm427, %v1105, %v1236
        %v1265 = vld [vmem:[%s6] sm:$0xff]
        %v1266 = vld [vmem:[%s7] sm:$0xff]
        %1268 = vset.pattern.permute.xlu0 0
        %1269 = vperm.xlu0 %1268, %v1266
        %v1270 = vpop.permute.xlu0 %1269
        %1284 = vrot.lane.b32.xlu0 %v1253, 76
        %v1285 = vpop.permute.xlu0 %1284
        %1286 = vrot.lane.b32.xlu0 %v1254, 76
        %v1287 = vpop.permute.xlu0 %1286
        %1288 = vrot.lane.b32.xlu0 %v1255, 76
        %v1289 = vpop.permute.xlu0 %1288
        %1290 = vrot.lane.b32.xlu0 %v1256, 76
        %v1291 = vpop.permute.xlu0 %1290
        %1292 = vrot.lane.b32.xlu0 %v1257, 76
        %v1293 = vpop.permute.xlu0 %1292
        %1294 = vrot.lane.b32.xlu0 %v1258, 76
        %v1295 = vpop.permute.xlu0 %1294
        %1296 = vrot.lane.b32.xlu0 %v1259, 76
        %v1297 = vpop.permute.xlu0 %1296
        %1298 = vrot.lane.b32.xlu0 %v1260, 76
        %v1299 = vpop.permute.xlu0 %1298
        %1300 = vrot.lane.b32.xlu0 %v1261, 76
        %v1301 = vpop.permute.xlu0 %1300
        %1302 = vrot.lane.b32.xlu0 %v1262, 76
        %v1303 = vpop.permute.xlu0 %1302
        %1304 = vrot.lane.b32.xlu0 %v1263, 76
        %v1305 = vpop.permute.xlu0 %1304
        %1306 = vrot.lane.b32.xlu0 %v1264, 76
        %v1307 = vpop.permute.xlu0 %1306
        %1308 = vrot.lane.b32.xlu0 %v1251, 76
        %v1309 = vpop.permute.xlu0 %1308
        %1310 = vrot.lane.b32.xlu0 %v1252, 76
        %v1311 = vpop.permute.xlu0 %1310
        %1312 = vrot.lane.b32.xlu0 %v1250, 76
        %v1313 = vpop.permute.xlu0 %1312
        %v1314 = vsel %vm1031, %v1285, %v1287
        %v1315 = vsel %vm1031, %v1287, %v1289
        %v1316 = vsel %vm1031, %v1291, %v1293
        %v1317 = vsel %vm1031, %v1293, %v1295
        %v1318 = vsel %vm1031, %v1297, %v1299
        %v1319 = vsel %vm1031, %v1299, %v1301
        %v1320 = vsel %vm1031, %v1303, %v1305
        %v1321 = vsel %vm1031, %v1305, %v1307
        %v1322 = vsel %vm1031, %v1309, %v1311
        %v1323 = vsel %vm1031, %v1311, %v1313
        %v1333 = vsel %vm889, %v1265, 0
        %v1335 = vsel %vm427, %v1322, 0
        %v1337 = vsel %vm427, %v1323, 0
        %1339 = vmatprep.subr.mxu0 0.0
        %1340 = vmatpush1.msra.mxu0 0.0
        %1341 = vmatprep.subr.mxu0 0.0
        %1342 = vmatpush1.msra.mxu0 0.0
        %1343 = vmatprep.subr.mxu0 0.0
        %1344 = vmatpush1.msra.mxu0 0.0
        %1345 = vmatprep.subr.mxu0 0.0
        %1346 = vmatpush1.msra.mxu0 0.0
        %1347 = vmatprep.subr.mxu0 0.0
        %1348 = vmatpush1.msra.mxu0 0.0
        %1349 = vmatprep.subr.mxu0 0.0
        %1350 = vmatpush1.msra.mxu0 0.0
        %1351 = vmatprep.subr.mxu0 0.0
        %1352 = vmatpush1.msra.mxu0 0.0
        %1353 = vmatprep.subr.mxu0 0.0
        %1354 = vmatpush1.msra.mxu0 0.0
        %1355 = vmatprep.subr.mxu0 0.0
        %1356 = vmatpush1.msra.mxu0 0.0
        %1357 = vmatprep.subr.mxu0 0.0
        %1358 = vmatpush1.msra.mxu0 0.0
        %1359 = vmatprep.subr.mxu0 0.0
        %1360 = vmatpush1.msra.mxu0 0.0
        %1361 = vmatprep.subr.mxu0 %v1337
        %1362 = vmatpush1.msra.mxu0 %v1335
        %1363 = vmatprep.subr.mxu0 %v1321
        %1364 = vmatpush1.msra.mxu0 %v1320
        %1365 = vmatprep.subr.mxu0 %v1319
        %1366 = vmatpush1.msra.mxu0 %v1318
        %1367 = vmatprep.subr.mxu0 %v1317
        %1368 = vmatpush1.msra.mxu0 %v1316
        %1369 = vmatprep.subr.mxu0 %v1315
        %1370 = vmatpush1.msra.mxu0 %v1314
        %1371 = vmatprep.subr.mxu0 0.0
        %1372 = vmatpush2.msra.mxu0 0.0
        %1373 = vmatprep.subr.mxu0 0.0
        %1374 = vmatpush2.msra.mxu0 0.0
        %1375 = vmatprep.subr.mxu0 0.0
        %1376 = vmatpush2.msra.mxu0 0.0
        %1377 = vmatprep.subr.mxu0 0.0
        %1378 = vmatpush2.msra.mxu0 0.0
        %1379 = vmatprep.subr.mxu0 0.0
        %1380 = vmatpush2.msra.mxu0 0.0
        %1381 = vmatprep.subr.mxu0 0.0
        %1382 = vmatpush2.msra.mxu0 0.0
        %1383 = vmatprep.subr.mxu0 0.0
        %1384 = vmatpush2.msra.mxu0 0.0
        %1385 = vmatprep.subr.mxu0 0.0
        %1386 = vmatpush2.msra.mxu0 0.0
        %1387 = vmatprep.subr.mxu0 0.0
        %1388 = vmatpush2.msra.mxu0 0.0
        %1389 = vmatprep.subr.mxu0 0.0
        %1390 = vmatpush2.msra.mxu0 0.0
        %1391 = vmatprep.subr.mxu0 0.0
        %1392 = vmatpush2.msra.mxu0 0.0
        %1393 = vmatprep.subr.mxu0 0.0
        %1394 = vmatpush2.msra.mxu0 0.0
        %1395 = vmatprep.subr.mxu0 0.0
        %1396 = vmatpush2.msra.mxu0 0.0
        %1397 = vmatprep.subr.mxu0 0.0
        %1398 = vmatpush2.msra.mxu0 0.0
        %1399 = vmatprep.subr.mxu0 0.0
        %1400 = vmatpush2.msra.mxu0 0.0
        %1401 = vmatprep.subr.mxu0 0.0
        %1402 = vmatpush2.msra.mxu0 0.0
        %1403 = vmatprep.mubr.f32.mxu0 0.0
        %1404 = vmatmul.mubr.f32.gmra.mxu0 %v1333
        %v1405 = vpop.f32.mrf.mxu0
        %v1406 = vadd.f32 %v1270, %v1405
        %v1407 = vpop.f32.mrf.mxu0
        %v1408 = vadd.f32 %v1270, %v1407
        %1409 = vdwg.mxu0
        %v1410 = vmax.f32 %v1406, 0.0
        %v1411 = vmax.f32 %v1408, 0.0
        %1412 = vst [vmem:[%s406 + $0x20] sm:$0xff] %v1410
        %1413 = vst [vmem:[%s406 + $0x28] sm:$0xff] %v1411
        %v1414 = vld [vmem:[%s8] sm:$0xff]
        %v1415 = vld [vmem:[%s9] sm:$0xff]
        %1417 = vset.pattern.permute.xlu0 0
        %1418 = vperm.xlu0 %1417, %v1415
        %v1419 = vpop.permute.xlu0 %1418
        %v1422 = vsel %vm423, %v1414, 0
        %1424 = vmatprep.subr.mxu0 0.0
        %1425 = vmatpush1.msra.mxu0 0.0
        %1426 = vmatprep.subr.mxu0 0.0
        %1427 = vmatpush1.msra.mxu0 0.0
        %1428 = vmatprep.subr.mxu0 0.0
        %1429 = vmatpush1.msra.mxu0 0.0
        %1430 = vmatprep.subr.mxu0 0.0
        %1431 = vmatpush1.msra.mxu0 0.0
        %1432 = vmatprep.subr.mxu0 0.0
        %1433 = vmatpush1.msra.mxu0 0.0
        %1434 = vmatprep.subr.mxu0 0.0
        %1435 = vmatpush1.msra.mxu0 0.0
        %1436 = vmatprep.subr.mxu0 0.0
        %1437 = vmatpush1.msra.mxu0 0.0
        %1438 = vmatprep.subr.mxu0 0.0
        %1439 = vmatpush1.msra.mxu0 0.0
        %1440 = vmatprep.subr.mxu0 0.0
        %1441 = vmatpush1.msra.mxu0 0.0
        %1442 = vmatprep.subr.mxu0 0.0
        %1443 = vmatpush1.msra.mxu0 0.0
        %1444 = vmatprep.subr.mxu0 0.0
        %1445 = vmatpush1.msra.mxu0 0.0
        %1446 = vmatprep.subr.mxu0 0.0
        %1447 = vmatpush1.msra.mxu0 0.0
        %1448 = vmatprep.subr.mxu0 0.0
        %1449 = vmatpush1.msra.mxu0 0.0
        %1450 = vmatprep.subr.mxu0 0.0
        %1451 = vmatpush1.msra.mxu0 0.0
        %1452 = vmatprep.subr.mxu0 0.0
        %1453 = vmatpush1.msra.mxu0 0.0
        %1454 = vmatprep.subr.mxu0 %v430
        %1455 = vmatpush1.msra.mxu0 %v428
        %1456 = vmatprep.subr.mxu0 0.0
        %1457 = vmatpush2.msra.mxu0 0.0
        %1458 = vmatprep.subr.mxu0 0.0
        %1459 = vmatpush2.msra.mxu0 0.0
        %1460 = vmatprep.subr.mxu0 0.0
        %1461 = vmatpush2.msra.mxu0 0.0
        %1462 = vmatprep.subr.mxu0 0.0
        %1463 = vmatpush2.msra.mxu0 0.0
        %1464 = vmatprep.subr.mxu0 0.0
        %1465 = vmatpush2.msra.mxu0 0.0
        %1466 = vmatprep.subr.mxu0 0.0
        %1467 = vmatpush2.msra.mxu0 0.0
        %1468 = vmatprep.subr.mxu0 0.0
        %1469 = vmatpush2.msra.mxu0 0.0
        %1470 = vmatprep.subr.mxu0 0.0
        %1471 = vmatpush2.msra.mxu0 0.0
        %1472 = vmatprep.subr.mxu0 0.0
        %1473 = vmatpush2.msra.mxu0 0.0
        %1474 = vmatprep.subr.mxu0 0.0
        %1475 = vmatpush2.msra.mxu0 0.0
        %1476 = vmatprep.subr.mxu0 0.0
        %1477 = vmatpush2.msra.mxu0 0.0
        %1478 = vmatprep.subr.mxu0 0.0
        %1479 = vmatpush2.msra.mxu0 0.0
        %1480 = vmatprep.subr.mxu0 0.0
        %1481 = vmatpush2.msra.mxu0 0.0
        %1482 = vmatprep.subr.mxu0 0.0
        %1483 = vmatpush2.msra.mxu0 0.0
        %1484 = vmatprep.subr.mxu0 0.0
        %1485 = vmatpush2.msra.mxu0 0.0
        %1486 = vmatprep.subr.mxu0 0.0
        %1487 = vmatpush2.msra.mxu0 0.0
        %1488 = vmatprep.mubr.f32.mxu0 0.0
        %1489 = vmatmul.mubr.f32.gmra.mxu0 %v1422
        %v1490 = vpop.f32.mrf.mxu0
        %v1491 = vadd.f32 %v1419, %v1490
        %v1492 = vpop.f32.mrf.mxu0
        %v1493 = vadd.f32 %v1419, %v1492
        %1494 = vdwg.mxu0
        %v1495 = vmax.f32 %v1491, 0.0
        %v1496 = vmax.f32 %v1493, 0.0
        %1497 = vst [vmem:[%s406 + $0x30] sm:$0xff] %v1495
        %1498 = vst [vmem:[%s406 + $0x38] sm:$0xff] %v1496
        %v1499 = vld [vmem:[%s10] sm:$0xff]
        %v1501 = vsel %vm423, %v1499, 0
        %1503 = vmatprep.subr.mxu0 0.0
        %1504 = vmatpush1.msra.mxu0 0.0
        %1505 = vmatprep.subr.mxu0 0.0
        %1506 = vmatpush1.msra.mxu0 0.0
        %1507 = vmatprep.subr.mxu0 0.0
        %1508 = vmatpush1.msra.mxu0 0.0
        %1509 = vmatprep.subr.mxu0 0.0
        %1510 = vmatpush1.msra.mxu0 0.0
        %1511 = vmatprep.subr.mxu0 0.0
        %1512 = vmatpush1.msra.mxu0 0.0
        %1513 = vmatprep.subr.mxu0 0.0
        %1514 = vmatpush1.msra.mxu0 0.0
        %1515 = vmatprep.subr.mxu0 0.0
        %1516 = vmatpush1.msra.mxu0 0.0
        %1517 = vmatprep.subr.mxu0 0.0
        %1518 = vmatpush1.msra.mxu0 0.0
        %1519 = vmatprep.subr.mxu0 0.0
        %1520 = vmatpush1.msra.mxu0 0.0
        %1521 = vmatprep.subr.mxu0 0.0
        %1522 = vmatpush1.msra.mxu0 0.0
        %1523 = vmatprep.subr.mxu0 0.0
        %1524 = vmatpush1.msra.mxu0 0.0
        %1525 = vmatprep.subr.mxu0 0.0
        %1526 = vmatpush1.msra.mxu0 0.0
        %1527 = vmatprep.subr.mxu0 0.0
        %1528 = vmatpush1.msra.mxu0 0.0
        %1529 = vmatprep.subr.mxu0 0.0
        %1530 = vmatpush1.msra.mxu0 0.0
        %1531 = vmatprep.subr.mxu0 0.0
        %1532 = vmatpush1.msra.mxu0 0.0
        %1533 = vmatprep.subr.mxu0 %v430
        %1534 = vmatpush1.msra.mxu0 %v428
        %1535 = vmatprep.subr.mxu0 0.0
        %1536 = vmatpush2.msra.mxu0 0.0
        %1537 = vmatprep.subr.mxu0 0.0
        %1538 = vmatpush2.msra.mxu0 0.0
        %1539 = vmatprep.subr.mxu0 0.0
        %1540 = vmatpush2.msra.mxu0 0.0
        %1541 = vmatprep.subr.mxu0 0.0
        %1542 = vmatpush2.msra.mxu0 0.0
        %1543 = vmatprep.subr.mxu0 0.0
        %1544 = vmatpush2.msra.mxu0 0.0
        %1545 = vmatprep.subr.mxu0 0.0
        %1546 = vmatpush2.msra.mxu0 0.0
        %1547 = vmatprep.subr.mxu0 0.0
        %1548 = vmatpush2.msra.mxu0 0.0
        %1549 = vmatprep.subr.mxu0 0.0
        %1550 = vmatpush2.msra.mxu0 0.0
        %1551 = vmatprep.subr.mxu0 0.0
        %1552 = vmatpush2.msra.mxu0 0.0
        %1553 = vmatprep.subr.mxu0 0.0
        %1554 = vmatpush2.msra.mxu0 0.0
        %1555 = vmatprep.subr.mxu0 0.0
        %1556 = vmatpush2.msra.mxu0 0.0
        %1557 = vmatprep.subr.mxu0 0.0
        %1558 = vmatpush2.msra.mxu0 0.0
        %1559 = vmatprep.subr.mxu0 0.0
        %1560 = vmatpush2.msra.mxu0 0.0
        %1561 = vmatprep.subr.mxu0 0.0
        %1562 = vmatpush2.msra.mxu0 0.0
        %1563 = vmatprep.subr.mxu0 0.0
        %1564 = vmatpush2.msra.mxu0 0.0
        %1565 = vmatprep.subr.mxu0 0.0
        %1566 = vmatpush2.msra.mxu0 0.0
        %1567 = vmatprep.mubr.f32.mxu0 0.0
        %1568 = vmatmul.mubr.f32.gmra.mxu0 %v1501
        %v1569 = vpop.f32.mrf.mxu0
        %v1570 = vadd.f32 0.0, %v1569
        %v1571 = vpop.f32.mrf.mxu0
        %v1572 = vadd.f32 0.0, %v1571
        %1573 = vdwg.mxu0
        %v1574 = vadd.f32 %v1570, %v1572
        %1575 = vadd.xlane.f32.xlu0 %v1574
        %v1576 = vpop.xlane.xlu0 %1575
        %v1577 = vmul.f32 %v1576, 0.00390625
        %v1578 = vld [vmem:[%s11] sm:$0xff]
        %v1579 = vadd.f32 %v1577, %v1578
        %v1580 = vmax.f32 %v1579, 0.0
        %1582 = vset.pattern.permute.xlu0 0
        %1583 = vperm.xlu0 %1582, %v1580
        %v1584 = vpop.permute.xlu0 %1583
        %1586 = vst [vmem:[%s406 + $0x40] sm:$0xff] %v1584
        %1587 = vst [vmem:[%s406 + $0x48] sm:$0xff] %v1584
        %s1588 = sand.u32 %s291, 1
        %s1589 = scalar_lea.sflag [#allocation3], %s1588
        %s1590 = sand.u32 %s291, 1
        %s1591 = smul.addr %s1590, 80
        %s1592 = scalar_lea.vmem [#allocation2], %s1591
        // Predicated region
        $region69: #{tpu_custom_call.1} parent=67 // pred_check
          %p1593 = pneg %p301
        $region70: #{tpu_custom_call.1} parent=67 // pred_check_branch
          %1595 = sbr.rel (%p1593) target = $region72
        $region71: #{tpu_custom_call.1} parent=67 // pred_region
          %s1597 = ssub.s32 1280, 1280
          %1598 = vsyncadd %s1589, %s1597
          %s1599 = smul.addr %s26, 10
          %s1600 = smul.addr %s1599, 128
          %s1601 = scalar_lea.hbm %s12, %s1600
          %s1602 = sshll.u32 %s1592, 4
          %s1603 = int_to_ptr.vmem [resolvable:$true] %s1602
          %1608 = dma.vmem_to_hbm [thread:$0]  %s1603, 1280, %s1601, %s1589, 256, 256, 16
        $region72: #{tpu_custom_call.1} parent=67 // pred_fallthru
          _
      $region68: #{tpu_custom_call.1} parent=5 // pred_fallthru
        _
      %p1609 = scmp.le.s32.totalorder 2, %s21
      // Predicated region
      $region73: #{tpu_custom_call.1} parent=5 // pred_check
        %p1610 = pneg %p1609
      $region74: #{tpu_custom_call.1} parent=5 // pred_check_branch
        %1612 = sbr.rel (%p1610) target = $region76
      $region75: #{tpu_custom_call.1} parent=5 // pred_region
        %s1613 = ssub.s32 %s21, 2
        // Predicated region
        $region77: #{tpu_custom_call.1} parent=75 // pred_check
          %p1614 = pneg %p307
        $region78: #{tpu_custom_call.1} parent=75 // pred_check_branch
          %1616 = sbr.rel (%p1614) target = $region80
        $region79: #{tpu_custom_call.1} parent=75 // pred_region
          %s1617 = sand.u32 %s292, 1
          %s1618 = scalar_lea.sflag [#allocation3], %s1617
          %s1619 = sand.u32 %s292, 1
          %s1620 = smul.addr %s1619, 80
          %s1621 = scalar_lea.vmem [#allocation2], %s1620
          %1622 = dma.done %s1618, 1280
        $region80: #{tpu_custom_call.1} parent=75 // pred_fallthru
          _
      $region76: #{tpu_custom_call.1} parent=5 // pred_fallthru
        _
    $region6: #{tpu_custom_call.1} parent=1 // loop_footer
      %s25 = sadd.s32 1, %s21
    $region7: #{tpu_custom_call.1} parent=1 // loop_footer_branch
      %20 = sbr.rel target = $region3
    $region8: #{tpu_custom_call.1} parent=1 // loop_exit
      _
    %1623 = vsyncpa [#allocation3], 1
    %s1624 = scalar_lea.sflag [#allocation3], 1
    %1625 = vsyncpa %s1624, 1

</llo_original>
